<compile_context>
chip_gen: v6e
topology: v6e:2x2x1
jax: 0.10.0
libtpu: 0.0.40
codegen_flags: <defaults>
</compile_context>

<pallas_src>
import jax
import jax.numpy as jnp
from jax.experimental import pallas as pl
from jax.experimental.pallas import tpu as pltpu

_MiB = 1024 * 1024
_ROW_TILE_CAP = 2048          # 1024-2048 row blocks already hit ~86%+ of HBM roofline
_SMALL_BYTES = 1 * _MiB       # below this, a plain (fusable) jnp.pad wins


def _augment_kernel(x_ref, o_ref):
    d = x_ref.shape[-1]
    # One full-width (unmasked, lane-dense) zero store into the VMEM output
    # block, then overwrite the first d feature columns.  Avoids any
    # in-register concat / XLU relayout; the HBM writeback is one lane-dense
    # DMA per block either way.
    o_ref[...] = jnp.zeros(o_ref.shape, dtype=o_ref.dtype)
    o_ref[:, :d] = x_ref[...]


def _roundup(x: int, m: int) -> int:
    return ((x + m - 1) // m) * m


def _vmem_budgets() -> tuple[int, int]:
    """(vmem_limit_bytes, total double-buffered footprint budget), per chip gen."""
    try:
        cap = pltpu.get_tpu_info().vmem_capacity_bytes
    except Exception:  # non-TPU tracing / older API: be conservative (v7x-sized)
        cap = 64 * _MiB
    if cap <= 96 * _MiB:          # v7x: 64 MiB physical per TensorCore
        return 48 * _MiB, 32 * _MiB
    return 64 * _MiB, 48 * _MiB   # v5e / v6e: 128 MiB physical


def _pick_row_tile(b: int, d: int, n_out: int, itemsize: int,
                   footprint_budget: int):
    """Largest dtype-aware sublane tile whose padded, double-buffered in+out
    VMEM footprint stays within budget.  Returns None if even the minimum
    tile does not fit (extremely wide features)."""
    packing = max(1, 4 // itemsize)        # rows packed per 32-bit sublane
    min_rows = 8 * packing                 # f32: 8, bf16/f16: 16, int8/fp8: 32
    # Padded lane footprint of one input block + one output block, per row.
    bytes_per_row = (_roundup(d, 128) + _roundup(n_out, 128)) * itemsize
    max_rows = footprint_budget // (2 * bytes_per_row)   # 2x double buffering
    if max_rows < min_rows:
        return None
    t = min(max_rows, _roundup(b, min_rows), _ROW_TILE_CAP)
    return max(min_rows, (t // min_rows) * min_rows)


def augment(y: jax.Array, aug_dim: int) -> jax.Array:
    """Pallas equivalent of Augment.forward: append `aug_dim` zero features."""
    assert y.ndim == 2, "Augment is well-defined for 2-D (batch, features) inputs"
    assert aug_dim >= 0, "aug_dim must be non-negative"
    b, d = y.shape
    if aug_dim == 0:
        return y
    n_out = d + aug_dim
    itemsize = jnp.dtype(y.dtype).itemsize

    # Tiny shapes: pallas_call launch + per-step overhead dominates the <1 us
    # of data movement, and XLA can fuse a plain pad into neighbours.
    if b * n_out * itemsize < _SMALL_BYTES:
        return jnp.pad(y, ((0, 0), (0, aug_dim)))

    vmem_limit, footprint_budget = _vmem_budgets()
    row_tile = _pick_row_tile(b, d, n_out, itemsize, footprint_budget)
    if row_tile is None:
        # TODO(synk): add a second (column) grid axis for extremely wide d so
        # huge feature dims stay within v7x's 64 MiB VMEM without this fallback.
        return jnp.pad(y, ((0, 0), (0, aug_dim)))

    grid = (pl.cdiv(b, row_tile),)   # ragged last block is masked by Pallas
    cost = pl.CostEstimate(
        flops=0,
        transcendentals=0,
        bytes_accessed=(b * d + b * n_out) * itemsize,
    )
    out_shape = jax.ShapeDtypeStruct((b, n_out), y.dtype)
    in_specs = [pl.BlockSpec((row_tile, d), lambda i: (i, 0))]
    out_specs = pl.BlockSpec((row_tile, n_out), lambda i: (i, 0))

    def _call(semantics):
        return pl.pallas_call(
            _augment_kernel,
            out_shape=out_shape,
            grid=grid,
            in_specs=in_specs,
            out_specs=out_specs,
            compiler_params=pltpu.CompilerParams(
                dimension_semantics=(semantics,),
                vmem_limit_bytes=vmem_limit,
            ),
            cost_estimate=cost,
        )(y)

    # On v7x, CORE_PARALLEL actually shards the row grid across both
    # TensorCores (the plain "parallel" string does not change codegen).
    # Fall back to "parallel" if this chip / grid shape rejects it.
    core_parallel = getattr(pltpu, "CORE_PARALLEL", "parallel")
    try:
        return _call(core_parallel)
    except Exception:
        return _call("parallel")


if __name__ == "__main__":
    key = jax.random.PRNGKey(0)

    def ref(y, aug_dim):
        z = jnp.zeros(y.shape[:-1] + (aug_dim,), y.dtype)
        return jnp.concatenate([y, z], axis=1)

    cases = [
        # (batch, features, aug_dim, dtype)
        (8, 32, 4, jnp.float32),        # module-scale demo (small-shape fast path)
        (5000, 256, 8, jnp.float32),    # kernel path: multi-block grid + ragged last tile
        (2048, 300, 20, jnp.bfloat16),  # kernel path: bf16 sublane tile, d % 128 != 0
    ]
    for i, (b, d, aug_dim, dtype) in enumerate(cases):
        key, sub = jax.random.split(key)
        y = jax.random.normal(sub, (b, d), dtype=dtype)
        out = jax.block_until_ready(augment(y, aug_dim))
        assert out.shape == (b, d + aug_dim), (i, out.shape)
        assert out.dtype == y.dtype, (i, out.dtype)
        assert jnp.array_equal(out, ref(y, aug_dim)), f"case {i}: mismatch vs reference"

    print("KERNEL_OK")
</pallas_src>

<mosaic_0001>
module attributes {stable_mosaic.version = 11 : i64} {
  func.func @_augment_kernel(%arg0: i32, %arg1: memref<2048x256xf32, #tpu.memory_space<vmem>>, %arg2: memref<2048x264xf32, #tpu.memory_space<vmem>>) attributes {dimension_semantics = [#tpu.dimension_semantics<core_parallel>], iteration_bounds = array<i64: 3>, scalar_prefetch = 0 : i64, scratch_operands = 0 : i64, tpu.core_type = #tpu.core_type<tc>, window_params = [{transform_indices = @transform_0, window_bounds = array<i64: 2048, 256>}, {transform_indices = @transform_1, window_bounds = array<i64: 2048, 264>}]} {
    %cst = arith.constant 0.000000e+00 : f32
    %0 = vector.broadcast %cst : f32 to vector<2048x264xf32>
    %c0 = arith.constant 0 : index
    %c0_0 = arith.constant 0 : index
    %1 = vector.load %arg2[%c0, %c0_0] : memref<2048x264xf32, #tpu.memory_space<vmem>>, vector<2048x264xf32>
    tpu.vector_store %arg2[%c0, %c0_0], %0 {strides = array<i32>} : memref<2048x264xf32, #tpu.memory_space<vmem>>, vector<2048x264xf32>,
    %c0_1 = arith.constant 0 : index
    %c0_2 = arith.constant 0 : index
    %2 = vector.load %arg1[%c0_1, %c0_2] : memref<2048x256xf32, #tpu.memory_space<vmem>>, vector<2048x256xf32>
    %c0_3 = arith.constant 0 : index
    %c0_4 = arith.constant 0 : index
    %3 = vector.load %arg2[%c0_3, %c0_4] : memref<2048x264xf32, #tpu.memory_space<vmem>>, vector<2048x256xf32>
    tpu.vector_store %arg2[%c0_3, %c0_4], %2 {strides = array<i32>} : memref<2048x264xf32, #tpu.memory_space<vmem>>, vector<2048x256xf32>,
    return
  }
  func.func @transform_0(%arg0: i32) -> (i32, i32) {
    %c0_i32 = arith.constant 0 : i32
    %c0_i32_0 = arith.constant 0 : i32
    return %arg0, %c0_i32 : i32, i32
  }
  func.func @transform_1(%arg0: i32) -> (i32, i32) {
    %c0_i32 = arith.constant 0 : i32
    %c0_i32_0 = arith.constant 0 : i32
    return %arg0, %c0_i32 : i32, i32
  }
}

module attributes {stable_mosaic.version = 11 : i64} {
  func.func @_augment_kernel(%arg0: i32, %arg1: memref<2048x256xf32, #tpu.memory_space<vmem>>, %arg2: memref<2048x264xf32, #tpu.memory_space<vmem>>) attributes {dimension_semantics = [#tpu.dimension_semantics<parallel>], iteration_bounds = array<i64: 3>, scalar_prefetch = 0 : i64, scratch_operands = 0 : i64, tpu.core_type = #tpu.core_type<tc>, window_params = [{transform_indices = @transform_0, window_bounds = array<i64: 2048, 256>}, {transform_indices = @transform_1, window_bounds = array<i64: 2048, 264>}]} {
    %cst = arith.constant 0.000000e+00 : f32
    %0 = vector.broadcast %cst : f32 to vector<2048x264xf32>
    %c0 = arith.constant 0 : index
    %c0_0 = arith.constant 0 : index
    %1 = vector.load %arg2[%c0, %c0_0] : memref<2048x264xf32, #tpu.memory_space<vmem>>, vector<2048x264xf32>
    tpu.vector_store %arg2[%c0, %c0_0], %0 {strides = array<i32>} : memref<2048x264xf32, #tpu.memory_space<vmem>>, vector<2048x264xf32>,
    %c0_1 = arith.constant 0 : index
    %c0_2 = arith.constant 0 : index
    %2 = vector.load %arg1[%c0_1, %c0_2] : memref<2048x256xf32, #tpu.memory_space<vmem>>, vector<2048x256xf32>
    %c0_3 = arith.constant 0 : index
    %c0_4 = arith.constant 0 : index
    %3 = vector.load %arg2[%c0_3, %c0_4] : memref<2048x264xf32, #tpu.memory_space<vmem>>, vector<2048x256xf32>
    tpu.vector_store %arg2[%c0_3, %c0_4], %2 {strides = array<i32>} : memref<2048x264xf32, #tpu.memory_space<vmem>>, vector<2048x256xf32>,
    return
  }
  func.func @transform_0(%arg0: i32) -> (i32, i32) {
    %c0_i32 = arith.constant 0 : i32
    %c0_i32_0 = arith.constant 0 : i32
    return %arg0, %c0_i32 : i32, i32
  }
  func.func @transform_1(%arg0: i32) -> (i32, i32) {
    %c0_i32 = arith.constant 0 : i32
    %c0_i32_0 = arith.constant 0 : i32
    return %arg0, %c0_i32 : i32, i32
  }
}

</mosaic_0001>

<llo_original>
// kernel: tpu_custom_call.1
$region0: #{tpu_custom_call.1}
  #allocation0 [shape = 'u32[]', space=smem, size = 0x4, offset = 0x4, fixed_abs, tag = 'smem constant byte address 0x4 - core index']
  #allocation1 [shape = 'u32[144,128]{1,0:T(1,128)}', space=vmem, size = 0x12000, scoped, tag = 'internal scratch']
  %s0 = inlined_call_operand.hbm [shape: f32[5000,256], index: 0, kind: input, shape index: {}]
  %s1 = inlined_call_operand.vmem [shape: f32[5000,264], index: 1, kind: output, shape index: {}]
  %s2 = sld [smem:[#allocation0]]
  $region67: #{tpu_custom_call.1} parent=0
    _
  %s4 = ssub.s32 1, %s2
  %s5 = scalar_select 0, %s4, %s2
  $region1: #{tpu_custom_call.1} parent=0
    #allocation2 [shape = 'u8[4194304]{0}', space=vmem, size = 0x400000, scoped, tag = 'input window, operand 0']
    #allocation3 [shape = 's32[2]{0}', space=sflag, size = 0x8, scoped, tag = 'scoped memory for tpu_custom_call.1']
    #allocation4 [shape = 'u8[6291456]{0}', space=vmem, size = 0x600000, scoped, tag = 'output window, operand 0']
    %6 = vsyncpa [#allocation3], 0
    %s7 = scalar_lea.sflag [#allocation3], 1
    %8 = vsyncpa %s7, 0
    loop: start=0, step=1, limit=5
    $region2: #{tpu_custom_call.1} parent=1 // loop_pre_header
      _
    $region3: #{tpu_custom_call.1} parent=1 // loop_header
      %s10 = sphi 0, %s14
      %p11 = scmp.ge.s32.totalorder %s10, 5
      %s20 = sphi 0, %s22
      %s23 = sphi 0, %s20
      %s24 = sphi 0, %s23
      %s40 = sphi 0, %s24
      %s46 = sphi 0, %s48
      %s49 = sphi 0, %s46
      %s50 = sphi 0, %s49
      %s66 = sphi 0, %s50
    $region4: #{tpu_custom_call.1} parent=1 // loop_header_branch
      %13 = sbr.rel (%p11) target = $region8
    $region5: #{tpu_custom_call.1} parent=1 // loop_body
      %s15 = ssub.s32 %s10, 1
      %s16 = ssub.s32 %s10, 2
      %s17 = sadd.s32 %s10, 1
      %s18 = ssub.s32 %s10, %s17
      %p19 = scmp.eq.s32.totalorder %s18, 0
      %s21 = sadd.s32 %s20, 1
      %s22 = scalar_select %p19, %s20, %s21
      %p25 = pneg %p19
      %p26 = scmp.eq.s32.totalorder %s10, 2
      %p27 = por %p25, %p26
      %p28 = scmp.ne.s32.totalorder %s20, %s23
      %p29 = scmp.eq.s32.totalorder %s10, 0
      %p30 = por %p28, %p29
      %p31 = scmp.ne.s32.totalorder %s20, %s23
      %p32 = scmp.eq.s32.totalorder %s15, 2
      %p33 = por %p31, %p32
      %p34 = scmp.ne.s32.totalorder %s23, %s24
      %p35 = scmp.eq.s32.totalorder %s15, 0
      %p36 = por %p34, %p35
      %p37 = scmp.ne.s32.totalorder %s23, %s24
      %p38 = scmp.eq.s32.totalorder %s16, 2
      %p39 = por %p37, %p38
      %p41 = scmp.ne.s32.totalorder %s24, %s40
      %p42 = scmp.eq.s32.totalorder %s16, 0
      %p43 = por %p41, %p42
      %s44 = ssub.s32 %s10, %s17
      %p45 = scmp.eq.s32.totalorder %s44, 0
      %s47 = sadd.s32 %s46, 1
      %s48 = scalar_select %p45, %s46, %s47
      %p51 = pneg %p45
      %p52 = scmp.eq.s32.totalorder %s10, 2
      %p53 = por %p51, %p52
      %p54 = scmp.ne.s32.totalorder %s46, %s49
      %p55 = scmp.eq.s32.totalorder %s10, 0
      %p56 = por %p54, %p55
      %p57 = scmp.ne.s32.totalorder %s46, %s49
      %p58 = scmp.eq.s32.totalorder %s15, 2
      %p59 = por %p57, %p58
      %p60 = scmp.ne.s32.totalorder %s49, %s50
      %p61 = scmp.eq.s32.totalorder %s15, 0
      %p62 = por %p60, %p61
      %p63 = scmp.ne.s32.totalorder %s49, %s50
      %p64 = scmp.eq.s32.totalorder %s16, 2
      %p65 = por %p63, %p64
      %p67 = scmp.ne.s32.totalorder %s50, %s66
      %p68 = scmp.eq.s32.totalorder %s16, 0
      %p69 = por %p67, %p68
      %p70 = scmp.le.s32.totalorder 1, %s10
      %p71 = scmp.lt.s32.totalorder %s10, 4
      %p72 = pnand %p70, %p71
      %p73 = pneg %p72
      // Predicated region
      $region9: #{tpu_custom_call.1} parent=5 // pred_check
        _
      $region10: #{tpu_custom_call.1} parent=5 // pred_check_branch
        %75 = sbr.rel (%p72) target = $region12
      $region11: #{tpu_custom_call.1} parent=5 // pred_region
        %s76 = ssub.s32 %s10, 1
      $region12: #{tpu_custom_call.1} parent=5 // pred_fallthru
        _
      %p77 = scmp.lt.s32.totalorder %s10, 3
      // Predicated region
      $region13: #{tpu_custom_call.1} parent=5 // pred_check
        %p78 = pneg %p77
      $region14: #{tpu_custom_call.1} parent=5 // pred_check_branch
        %80 = sbr.rel (%p78) target = $region16
      $region15: #{tpu_custom_call.1} parent=5 // pred_region
        // Predicated region
        $region17: #{tpu_custom_call.1} parent=15 // pred_check
          %p81 = pneg %p30
        $region18: #{tpu_custom_call.1} parent=15 // pred_check_branch
          %83 = sbr.rel (%p81) target = $region20
        $region19: #{tpu_custom_call.1} parent=15 // pred_region
          %s84 = sand.u32 %s20, 1
          %s85 = scalar_lea.sflag [#allocation3], %s84
          %s86 = sand.u32 %s20, 1
          %s87 = smul.addr %s86, 4096
          %s88 = scalar_lea.vmem [#allocation2], %s87
          %s89 = smul.u32 256, %s10
          %s90 = ssub.s32 625, %s89
          %p91 = scmp.lt.s32.totalorder %s90, 256
          %s92 = scalar_select %p91, %s90, 256
          %s93 = smul.u32 128, %s92
          %s94 = smul.u32 %s93, 2
          %s96 = ssub.s32 65536, %s94
          %97 = vsyncadd %s85, %s96
          %p98 = scmp.ne.s32.totalorder 0, %s94
          %s99 = smul.addr %s89, 2
          %s100 = smul.addr %s99, 128
          %s101 = scalar_lea.hbm %s0, %s100
          %s102 = smul.u32 16, %s92
          %s103 = sshll.u32 %s88, 4
          %s104 = int_to_ptr.vmem [resolvable:$true] %s103
          %s105 = sshll.u32 %s102, 4
          %109 = dma.hbm_to_vmem [thread:$0]  (%p98), %s101, %s105, %s104, %s85, 256, 256, 16
        $region20: #{tpu_custom_call.1} parent=15 // pred_fallthru
          _
      $region16: #{tpu_custom_call.1} parent=5 // pred_fallthru
        _
      %p110 = scmp.le.s32.totalorder 1, %s10
      %p111 = scmp.lt.s32.totalorder %s10, 4
      %p112 = pnand %p110, %p111
      %p113 = pneg %p112
      // Predicated region
      $region21: #{tpu_custom_call.1} parent=5 // pred_check
        _
      $region22: #{tpu_custom_call.1} parent=5 // pred_check_branch
        %115 = sbr.rel (%p112) target = $region24
      $region23: #{tpu_custom_call.1} parent=5 // pred_region
        %s116 = ssub.s32 %s10, 1
        %s117 = sand.u32 %s23, 1
        %s118 = scalar_lea.sflag [#allocation3], %s117
        %s119 = sand.u32 %s23, 1
        %s120 = smul.addr %s119, 4096
        %s121 = scalar_lea.vmem [#allocation2], %s120
        // Predicated region
        $region25: #{tpu_custom_call.1} parent=23 // pred_check
          %p122 = pneg %p36
        $region26: #{tpu_custom_call.1} parent=23 // pred_check_branch
          %124 = sbr.rel (%p122) target = $region28
        $region27: #{tpu_custom_call.1} parent=23 // pred_region
          %125 = dma.done %s118, 65536
        $region28: #{tpu_custom_call.1} parent=23 // pred_fallthru
          _
        %s126 = sand.u32 %s23, 1
        %s127 = scalar_lea.sflag [#allocation3], %s126
        %s128 = sand.u32 %s23, 1
        %s129 = smul.addr %s128, 4096
        %s130 = scalar_lea.vmem [#allocation2], %s129
        %p131 = pneg %p36
        %p132 = pneg %p33
        %p133 = pneg %p62
        %p134 = pneg %p59
        %s135 = sand.u32 %s49, 1
        %s136 = sand.u32 %s49, 1
        %s137 = smul.addr %s136, 6144
        %s138 = scalar_lea.vmem [#allocation4], %s137
        %s139 = smul.u32 256, %s15
        %s140 = ssub.s32 625, %s139
        %p141 = scmp.lt.s32.totalorder %s140, 256
        %s142 = scalar_select %p141, %s140, 256
        %s143 = smul.u32 128, %s142
        %s144 = smul.u32 %s143, 2
        %s145 = smul.u32 256, %s15
        %s146 = ssub.s32 625, %s145
        %p147 = scmp.lt.s32.totalorder %s146, 256
        %s148 = scalar_select %p147, %s146, 256
        %s149 = smul.u32 128, %s148
        %s150 = smul.u32 %s149, 3
        %151 = vst [vmem:[%s138] sm:$0xff] 0.0
        %152 = vst [vmem:[%s138 + $0x8] sm:$0xff] 0.0
        %vm153 = vcmask 64512
        %154 = vst.msk [vmem:[%s138 + $0x10] sm:$0xff] %vm153, 0.0
        %155 = vst [vmem:[%s138 + $0x18] sm:$0xff] 0.0
        %156 = vst [vmem:[%s138 + $0x20] sm:$0xff] 0.0
        %157 = vst.msk [vmem:[%s138 + $0x28] sm:$0xff] %vm153, 0.0
        %158 = vst [vmem:[%s138 + $0x30] sm:$0xff] 0.0
        %159 = vst [vmem:[%s138 + $0x38] sm:$0xff] 0.0
        %160 = vst.msk [vmem:[%s138 + $0x40] sm:$0xff] %vm153, 0.0
        %161 = vst [vmem:[%s138 + $0x48] sm:$0xff] 0.0
        %162 = vst [vmem:[%s138 + $0x50] sm:$0xff] 0.0
        %163 = vst.msk [vmem:[%s138 + $0x58] sm:$0xff] %vm153, 0.0
        %164 = vst [vmem:[%s138 + $0x60] sm:$0xff] 0.0
        %165 = vst [vmem:[%s138 + $0x68] sm:$0xff] 0.0
        %166 = vst.msk [vmem:[%s138 + $0x70] sm:$0xff] %vm153, 0.0
        %167 = vst [vmem:[%s138 + $0x78] sm:$0xff] 0.0
        %168 = vst [vmem:[%s138 + $0x80] sm:$0xff] 0.0
        %169 = vst.msk [vmem:[%s138 + $0x88] sm:$0xff] %vm153, 0.0
        %170 = vst [vmem:[%s138 + $0x90] sm:$0xff] 0.0
        %171 = vst [vmem:[%s138 + $0x98] sm:$0xff] 0.0
        %172 = vst.msk [vmem:[%s138 + $0xa0] sm:$0xff] %vm153, 0.0
        %173 = vst [vmem:[%s138 + $0xa8] sm:$0xff] 0.0
        %174 = vst [vmem:[%s138 + $0xb0] sm:$0xff] 0.0
        %175 = vst.msk [vmem:[%s138 + $0xb8] sm:$0xff] %vm153, 0.0
        %176 = vst [vmem:[%s138 + $0xc0] sm:$0xff] 0.0
        %177 = vst [vmem:[%s138 + $0xc8] sm:$0xff] 0.0
        %178 = vst.msk [vmem:[%s138 + $0xd0] sm:$0xff] %vm153, 0.0
        %179 = vst [vmem:[%s138 + $0xd8] sm:$0xff] 0.0
        %180 = vst [vmem:[%s138 + $0xe0] sm:$0xff] 0.0
        %181 = vst.msk [vmem:[%s138 + $0xe8] sm:$0xff] %vm153, 0.0
        %182 = vst [vmem:[%s138 + $0xf0] sm:$0xff] 0.0
        %183 = vst [vmem:[%s138 + $0xf8] sm:$0xff] 0.0
        %184 = vst.msk [vmem:[%s138 + $0x100] sm:$0xff] %vm153, 0.0
        %185 = vst [vmem:[%s138 + $0x108] sm:$0xff] 0.0
        %186 = vst [vmem:[%s138 + $0x110] sm:$0xff] 0.0
        %187 = vst.msk [vmem:[%s138 + $0x118] sm:$0xff] %vm153, 0.0
        %188 = vst [vmem:[%s138 + $0x120] sm:$0xff] 0.0
        %189 = vst [vmem:[%s138 + $0x128] sm:$0xff] 0.0
        %190 = vst.msk [vmem:[%s138 + $0x130] sm:$0xff] %vm153, 0.0
        %191 = vst [vmem:[%s138 + $0x138] sm:$0xff] 0.0
        %192 = vst [vmem:[%s138 + $0x140] sm:$0xff] 0.0
        %193 = vst.msk [vmem:[%s138 + $0x148] sm:$0xff] %vm153, 0.0
        %194 = vst [vmem:[%s138 + $0x150] sm:$0xff] 0.0
        %195 = vst [vmem:[%s138 + $0x158] sm:$0xff] 0.0
        %196 = vst.msk [vmem:[%s138 + $0x160] sm:$0xff] %vm153, 0.0
        %197 = vst [vmem:[%s138 + $0x168] sm:$0xff] 0.0
        %198 = vst [vmem:[%s138 + $0x170] sm:$0xff] 0.0
        %199 = vst.msk [vmem:[%s138 + $0x178] sm:$0xff] %vm153, 0.0
        %200 = vst [vmem:[%s138 + $0x180] sm:$0xff] 0.0
        %201 = vst [vmem:[%s138 + $0x188] sm:$0xff] 0.0
        %202 = vst.msk [vmem:[%s138 + $0x190] sm:$0xff] %vm153, 0.0
        %203 = vst [vmem:[%s138 + $0x198] sm:$0xff] 0.0
        %204 = vst [vmem:[%s138 + $0x1a0] sm:$0xff] 0.0
        %205 = vst.msk [vmem:[%s138 + $0x1a8] sm:$0xff] %vm153, 0.0
        %206 = vst [vmem:[%s138 + $0x1b0] sm:$0xff] 0.0
        %207 = vst [vmem:[%s138 + $0x1b8] sm:$0xff] 0.0
        %208 = vst.msk [vmem:[%s138 + $0x1c0] sm:$0xff] %vm153, 0.0
        %209 = vst [vmem:[%s138 + $0x1c8] sm:$0xff] 0.0
        %210 = vst [vmem:[%s138 + $0x1d0] sm:$0xff] 0.0
        %211 = vst.msk [vmem:[%s138 + $0x1d8] sm:$0xff] %vm153, 0.0
        %212 = vst [vmem:[%s138 + $0x1e0] sm:$0xff] 0.0
        %213 = vst [vmem:[%s138 + $0x1e8] sm:$0xff] 0.0
        %214 = vst.msk [vmem:[%s138 + $0x1f0] sm:$0xff] %vm153, 0.0
        %215 = vst [vmem:[%s138 + $0x1f8] sm:$0xff] 0.0
        %216 = vst [vmem:[%s138 + $0x200] sm:$0xff] 0.0
        %217 = vst.msk [vmem:[%s138 + $0x208] sm:$0xff] %vm153, 0.0
        %218 = vst [vmem:[%s138 + $0x210] sm:$0xff] 0.0
        %219 = vst [vmem:[%s138 + $0x218] sm:$0xff] 0.0
        %220 = vst.msk [vmem:[%s138 + $0x220] sm:$0xff] %vm153, 0.0
        %221 = vst [vmem:[%s138 + $0x228] sm:$0xff] 0.0
        %222 = vst [vmem:[%s138 + $0x230] sm:$0xff] 0.0
        %223 = vst.msk [vmem:[%s138 + $0x238] sm:$0xff] %vm153, 0.0
        %224 = vst [vmem:[%s138 + $0x240] sm:$0xff] 0.0
        %225 = vst [vmem:[%s138 + $0x248] sm:$0xff] 0.0
        %226 = vst.msk [vmem:[%s138 + $0x250] sm:$0xff] %vm153, 0.0
        %227 = vst [vmem:[%s138 + $0x258] sm:$0xff] 0.0
        %228 = vst [vmem:[%s138 + $0x260] sm:$0xff] 0.0
        %229 = vst.msk [vmem:[%s138 + $0x268] sm:$0xff] %vm153, 0.0
        %230 = vst [vmem:[%s138 + $0x270] sm:$0xff] 0.0
        %231 = vst [vmem:[%s138 + $0x278] sm:$0xff] 0.0
        %232 = vst.msk [vmem:[%s138 + $0x280] sm:$0xff] %vm153, 0.0
        %233 = vst [vmem:[%s138 + $0x288] sm:$0xff] 0.0
        %234 = vst [vmem:[%s138 + $0x290] sm:$0xff] 0.0
        %235 = vst.msk [vmem:[%s138 + $0x298] sm:$0xff] %vm153, 0.0
        %236 = vst [vmem:[%s138 + $0x2a0] sm:$0xff] 0.0
        %237 = vst [vmem:[%s138 + $0x2a8] sm:$0xff] 0.0
        %238 = vst.msk [vmem:[%s138 + $0x2b0] sm:$0xff] %vm153, 0.0
        %239 = vst [vmem:[%s138 + $0x2b8] sm:$0xff] 0.0
        %240 = vst [vmem:[%s138 + $0x2c0] sm:$0xff] 0.0
        %241 = vst.msk [vmem:[%s138 + $0x2c8] sm:$0xff] %vm153, 0.0
        %242 = vst [vmem:[%s138 + $0x2d0] sm:$0xff] 0.0
        %243 = vst [vmem:[%s138 + $0x2d8] sm:$0xff] 0.0
        %244 = vst.msk [vmem:[%s138 + $0x2e0] sm:$0xff] %vm153, 0.0
        %245 = vst [vmem:[%s138 + $0x2e8] sm:$0xff] 0.0
        %246 = vst [vmem:[%s138 + $0x2f0] sm:$0xff] 0.0
        %247 = vst.msk [vmem:[%s138 + $0x2f8] sm:$0xff] %vm153, 0.0
        %248 = vst [vmem:[%s138 + $0x300] sm:$0xff] 0.0
        %249 = vst [vmem:[%s138 + $0x308] sm:$0xff] 0.0
        %250 = vst.msk [vmem:[%s138 + $0x310] sm:$0xff] %vm153, 0.0
        %251 = vst [vmem:[%s138 + $0x318] sm:$0xff] 0.0
        %252 = vst [vmem:[%s138 + $0x320] sm:$0xff] 0.0
        %253 = vst.msk [vmem:[%s138 + $0x328] sm:$0xff] %vm153, 0.0
        %254 = vst [vmem:[%s138 + $0x330] sm:$0xff] 0.0
        %255 = vst [vmem:[%s138 + $0x338] sm:$0xff] 0.0
        %256 = vst.msk [vmem:[%s138 + $0x340] sm:$0xff] %vm153, 0.0
        %257 = vst [vmem:[%s138 + $0x348] sm:$0xff] 0.0
        %258 = vst [vmem:[%s138 + $0x350] sm:$0xff] 0.0
        %259 = vst.msk [vmem:[%s138 + $0x358] sm:$0xff] %vm153, 0.0
        %260 = vst [vmem:[%s138 + $0x360] sm:$0xff] 0.0
        %261 = vst [vmem:[%s138 + $0x368] sm:$0xff] 0.0
        %262 = vst.msk [vmem:[%s138 + $0x370] sm:$0xff] %vm153, 0.0
        %263 = vst [vmem:[%s138 + $0x378] sm:$0xff] 0.0
        %264 = vst [vmem:[%s138 + $0x380] sm:$0xff] 0.0
        %265 = vst.msk [vmem:[%s138 + $0x388] sm:$0xff] %vm153, 0.0
        %266 = vst [vmem:[%s138 + $0x390] sm:$0xff] 0.0
        %267 = vst [vmem:[%s138 + $0x398] sm:$0xff] 0.0
        %268 = vst.msk [vmem:[%s138 + $0x3a0] sm:$0xff] %vm153, 0.0
        %269 = vst [vmem:[%s138 + $0x3a8] sm:$0xff] 0.0
        %270 = vst [vmem:[%s138 + $0x3b0] sm:$0xff] 0.0
        %271 = vst.msk [vmem:[%s138 + $0x3b8] sm:$0xff] %vm153, 0.0
        %272 = vst [vmem:[%s138 + $0x3c0] sm:$0xff] 0.0
        %273 = vst [vmem:[%s138 + $0x3c8] sm:$0xff] 0.0
        %274 = vst.msk [vmem:[%s138 + $0x3d0] sm:$0xff] %vm153, 0.0
        %275 = vst [vmem:[%s138 + $0x3d8] sm:$0xff] 0.0
        %276 = vst [vmem:[%s138 + $0x3e0] sm:$0xff] 0.0
        %277 = vst.msk [vmem:[%s138 + $0x3e8] sm:$0xff] %vm153, 0.0
        %278 = vst [vmem:[%s138 + $0x3f0] sm:$0xff] 0.0
        %279 = vst [vmem:[%s138 + $0x3f8] sm:$0xff] 0.0
        %280 = vst.msk [vmem:[%s138 + $0x400] sm:$0xff] %vm153, 0.0
        %281 = vst [vmem:[%s138 + $0x408] sm:$0xff] 0.0
        %282 = vst [vmem:[%s138 + $0x410] sm:$0xff] 0.0
        %283 = vst.msk [vmem:[%s138 + $0x418] sm:$0xff] %vm153, 0.0
        %284 = vst [vmem:[%s138 + $0x420] sm:$0xff] 0.0
        %285 = vst [vmem:[%s138 + $0x428] sm:$0xff] 0.0
        %286 = vst.msk [vmem:[%s138 + $0x430] sm:$0xff] %vm153, 0.0
        %287 = vst [vmem:[%s138 + $0x438] sm:$0xff] 0.0
        %288 = vst [vmem:[%s138 + $0x440] sm:$0xff] 0.0
        %289 = vst.msk [vmem:[%s138 + $0x448] sm:$0xff] %vm153, 0.0
        %290 = vst [vmem:[%s138 + $0x450] sm:$0xff] 0.0
        %291 = vst [vmem:[%s138 + $0x458] sm:$0xff] 0.0
        %292 = vst.msk [vmem:[%s138 + $0x460] sm:$0xff] %vm153, 0.0
        %293 = vst [vmem:[%s138 + $0x468] sm:$0xff] 0.0
        %294 = vst [vmem:[%s138 + $0x470] sm:$0xff] 0.0
        %295 = vst.msk [vmem:[%s138 + $0x478] sm:$0xff] %vm153, 0.0
        %296 = vst [vmem:[%s138 + $0x480] sm:$0xff] 0.0
        %297 = vst [vmem:[%s138 + $0x488] sm:$0xff] 0.0
        %298 = vst.msk [vmem:[%s138 + $0x490] sm:$0xff] %vm153, 0.0
        %299 = vst [vmem:[%s138 + $0x498] sm:$0xff] 0.0
        %300 = vst [vmem:[%s138 + $0x4a0] sm:$0xff] 0.0
        %301 = vst.msk [vmem:[%s138 + $0x4a8] sm:$0xff] %vm153, 0.0
        %302 = vst [vmem:[%s138 + $0x4b0] sm:$0xff] 0.0
        %303 = vst [vmem:[%s138 + $0x4b8] sm:$0xff] 0.0
        %304 = vst.msk [vmem:[%s138 + $0x4c0] sm:$0xff] %vm153, 0.0
        %305 = vst [vmem:[%s138 + $0x4c8] sm:$0xff] 0.0
        %306 = vst [vmem:[%s138 + $0x4d0] sm:$0xff] 0.0
        %307 = vst.msk [vmem:[%s138 + $0x4d8] sm:$0xff] %vm153, 0.0
        %308 = vst [vmem:[%s138 + $0x4e0] sm:$0xff] 0.0
        %309 = vst [vmem:[%s138 + $0x4e8] sm:$0xff] 0.0
        %310 = vst.msk [vmem:[%s138 + $0x4f0] sm:$0xff] %vm153, 0.0
        %311 = vst [vmem:[%s138 + $0x4f8] sm:$0xff] 0.0
        %312 = vst [vmem:[%s138 + $0x500] sm:$0xff] 0.0
        %313 = vst.msk [vmem:[%s138 + $0x508] sm:$0xff] %vm153, 0.0
        %314 = vst [vmem:[%s138 + $0x510] sm:$0xff] 0.0
        %315 = vst [vmem:[%s138 + $0x518] sm:$0xff] 0.0
        %316 = vst.msk [vmem:[%s138 + $0x520] sm:$0xff] %vm153, 0.0
        %317 = vst [vmem:[%s138 + $0x528] sm:$0xff] 0.0
        %318 = vst [vmem:[%s138 + $0x530] sm:$0xff] 0.0
        %319 = vst.msk [vmem:[%s138 + $0x538] sm:$0xff] %vm153, 0.0
        %320 = vst [vmem:[%s138 + $0x540] sm:$0xff] 0.0
        %321 = vst [vmem:[%s138 + $0x548] sm:$0xff] 0.0
        %322 = vst.msk [vmem:[%s138 + $0x550] sm:$0xff] %vm153, 0.0
        %323 = vst [vmem:[%s138 + $0x558] sm:$0xff] 0.0
        %324 = vst [vmem:[%s138 + $0x560] sm:$0xff] 0.0
        %325 = vst.msk [vmem:[%s138 + $0x568] sm:$0xff] %vm153, 0.0
        %326 = vst [vmem:[%s138 + $0x570] sm:$0xff] 0.0
        %327 = vst [vmem:[%s138 + $0x578] sm:$0xff] 0.0
        %328 = vst.msk [vmem:[%s138 + $0x580] sm:$0xff] %vm153, 0.0
        %329 = vst [vmem:[%s138 + $0x588] sm:$0xff] 0.0
        %330 = vst [vmem:[%s138 + $0x590] sm:$0xff] 0.0
        %331 = vst.msk [vmem:[%s138 + $0x598] sm:$0xff] %vm153, 0.0
        %332 = vst [vmem:[%s138 + $0x5a0] sm:$0xff] 0.0
        %333 = vst [vmem:[%s138 + $0x5a8] sm:$0xff] 0.0
        %334 = vst.msk [vmem:[%s138 + $0x5b0] sm:$0xff] %vm153, 0.0
        %335 = vst [vmem:[%s138 + $0x5b8] sm:$0xff] 0.0
        %336 = vst [vmem:[%s138 + $0x5c0] sm:$0xff] 0.0
        %337 = vst.msk [vmem:[%s138 + $0x5c8] sm:$0xff] %vm153, 0.0
        %338 = vst [vmem:[%s138 + $0x5d0] sm:$0xff] 0.0
        %339 = vst [vmem:[%s138 + $0x5d8] sm:$0xff] 0.0
        %340 = vst.msk [vmem:[%s138 + $0x5e0] sm:$0xff] %vm153, 0.0
        %341 = vst [vmem:[%s138 + $0x5e8] sm:$0xff] 0.0
        %342 = vst [vmem:[%s138 + $0x5f0] sm:$0xff] 0.0
        %343 = vst.msk [vmem:[%s138 + $0x5f8] sm:$0xff] %vm153, 0.0
        %344 = vst [vmem:[%s138 + $0x600] sm:$0xff] 0.0
        %345 = vst [vmem:[%s138 + $0x608] sm:$0xff] 0.0
        %346 = vst.msk [vmem:[%s138 + $0x610] sm:$0xff] %vm153, 0.0
        %347 = vst [vmem:[%s138 + $0x618] sm:$0xff] 0.0
        %348 = vst [vmem:[%s138 + $0x620] sm:$0xff] 0.0
        %349 = vst.msk [vmem:[%s138 + $0x628] sm:$0xff] %vm153, 0.0
        %350 = vst [vmem:[%s138 + $0x630] sm:$0xff] 0.0
        %351 = vst [vmem:[%s138 + $0x638] sm:$0xff] 0.0
        %352 = vst.msk [vmem:[%s138 + $0x640] sm:$0xff] %vm153, 0.0
        %353 = vst [vmem:[%s138 + $0x648] sm:$0xff] 0.0
        %354 = vst [vmem:[%s138 + $0x650] sm:$0xff] 0.0
        %355 = vst.msk [vmem:[%s138 + $0x658] sm:$0xff] %vm153, 0.0
        %356 = vst [vmem:[%s138 + $0x660] sm:$0xff] 0.0
        %357 = vst [vmem:[%s138 + $0x668] sm:$0xff] 0.0
        %358 = vst.msk [vmem:[%s138 + $0x670] sm:$0xff] %vm153, 0.0
        %359 = vst [vmem:[%s138 + $0x678] sm:$0xff] 0.0
        %360 = vst [vmem:[%s138 + $0x680] sm:$0xff] 0.0
        %361 = vst.msk [vmem:[%s138 + $0x688] sm:$0xff] %vm153, 0.0
        %362 = vst [vmem:[%s138 + $0x690] sm:$0xff] 0.0
        %363 = vst [vmem:[%s138 + $0x698] sm:$0xff] 0.0
        %364 = vst.msk [vmem:[%s138 + $0x6a0] sm:$0xff] %vm153, 0.0
        %365 = vst [vmem:[%s138 + $0x6a8] sm:$0xff] 0.0
        %366 = vst [vmem:[%s138 + $0x6b0] sm:$0xff] 0.0
        %367 = vst.msk [vmem:[%s138 + $0x6b8] sm:$0xff] %vm153, 0.0
        %368 = vst [vmem:[%s138 + $0x6c0] sm:$0xff] 0.0
        %369 = vst [vmem:[%s138 + $0x6c8] sm:$0xff] 0.0
        %370 = vst.msk [vmem:[%s138 + $0x6d0] sm:$0xff] %vm153, 0.0
        %371 = vst [vmem:[%s138 + $0x6d8] sm:$0xff] 0.0
        %372 = vst [vmem:[%s138 + $0x6e0] sm:$0xff] 0.0
        %373 = vst.msk [vmem:[%s138 + $0x6e8] sm:$0xff] %vm153, 0.0
        %374 = vst [vmem:[%s138 + $0x6f0] sm:$0xff] 0.0
        %375 = vst [vmem:[%s138 + $0x6f8] sm:$0xff] 0.0
        %376 = vst.msk [vmem:[%s138 + $0x700] sm:$0xff] %vm153, 0.0
        %377 = vst [vmem:[%s138 + $0x708] sm:$0xff] 0.0
        %378 = vst [vmem:[%s138 + $0x710] sm:$0xff] 0.0
        %379 = vst.msk [vmem:[%s138 + $0x718] sm:$0xff] %vm153, 0.0
        %380 = vst [vmem:[%s138 + $0x720] sm:$0xff] 0.0
        %381 = vst [vmem:[%s138 + $0x728] sm:$0xff] 0.0
        %382 = vst.msk [vmem:[%s138 + $0x730] sm:$0xff] %vm153, 0.0
        %383 = vst [vmem:[%s138 + $0x738] sm:$0xff] 0.0
        %384 = vst [vmem:[%s138 + $0x740] sm:$0xff] 0.0
        %385 = vst.msk [vmem:[%s138 + $0x748] sm:$0xff] %vm153, 0.0
        %386 = vst [vmem:[%s138 + $0x750] sm:$0xff] 0.0
        %387 = vst [vmem:[%s138 + $0x758] sm:$0xff] 0.0
        %388 = vst.msk [vmem:[%s138 + $0x760] sm:$0xff] %vm153, 0.0
        %389 = vst [vmem:[%s138 + $0x768] sm:$0xff] 0.0
        %390 = vst [vmem:[%s138 + $0x770] sm:$0xff] 0.0
        %391 = vst.msk [vmem:[%s138 + $0x778] sm:$0xff] %vm153, 0.0
        %392 = vst [vmem:[%s138 + $0x780] sm:$0xff] 0.0
        %393 = vst [vmem:[%s138 + $0x788] sm:$0xff] 0.0
        %394 = vst.msk [vmem:[%s138 + $0x790] sm:$0xff] %vm153, 0.0
        %395 = vst [vmem:[%s138 + $0x798] sm:$0xff] 0.0
        %396 = vst [vmem:[%s138 + $0x7a0] sm:$0xff] 0.0
        %397 = vst.msk [vmem:[%s138 + $0x7a8] sm:$0xff] %vm153, 0.0
        %398 = vst [vmem:[%s138 + $0x7b0] sm:$0xff] 0.0
        %399 = vst [vmem:[%s138 + $0x7b8] sm:$0xff] 0.0
        %400 = vst.msk [vmem:[%s138 + $0x7c0] sm:$0xff] %vm153, 0.0
        %401 = vst [vmem:[%s138 + $0x7c8] sm:$0xff] 0.0
        %402 = vst [vmem:[%s138 + $0x7d0] sm:$0xff] 0.0
        %403 = vst.msk [vmem:[%s138 + $0x7d8] sm:$0xff] %vm153, 0.0
        %404 = vst [vmem:[%s138 + $0x7e0] sm:$0xff] 0.0
        %405 = vst [vmem:[%s138 + $0x7e8] sm:$0xff] 0.0
        %406 = vst.msk [vmem:[%s138 + $0x7f0] sm:$0xff] %vm153, 0.0
        %407 = vst [vmem:[%s138 + $0x7f8] sm:$0xff] 0.0
        %408 = vst [vmem:[%s138 + $0x800] sm:$0xff] 0.0
        %409 = vst.msk [vmem:[%s138 + $0x808] sm:$0xff] %vm153, 0.0
        %410 = vst [vmem:[%s138 + $0x810] sm:$0xff] 0.0
        %411 = vst [vmem:[%s138 + $0x818] sm:$0xff] 0.0
        %412 = vst.msk [vmem:[%s138 + $0x820] sm:$0xff] %vm153, 0.0
        %413 = vst [vmem:[%s138 + $0x828] sm:$0xff] 0.0
        %414 = vst [vmem:[%s138 + $0x830] sm:$0xff] 0.0
        %415 = vst.msk [vmem:[%s138 + $0x838] sm:$0xff] %vm153, 0.0
        %416 = vst [vmem:[%s138 + $0x840] sm:$0xff] 0.0
        %417 = vst [vmem:[%s138 + $0x848] sm:$0xff] 0.0
        %418 = vst.msk [vmem:[%s138 + $0x850] sm:$0xff] %vm153, 0.0
        %419 = vst [vmem:[%s138 + $0x858] sm:$0xff] 0.0
        %420 = vst [vmem:[%s138 + $0x860] sm:$0xff] 0.0
        %421 = vst.msk [vmem:[%s138 + $0x868] sm:$0xff] %vm153, 0.0
        %422 = vst [vmem:[%s138 + $0x870] sm:$0xff] 0.0
        %423 = vst [vmem:[%s138 + $0x878] sm:$0xff] 0.0
        %424 = vst.msk [vmem:[%s138 + $0x880] sm:$0xff] %vm153, 0.0
        %425 = vst [vmem:[%s138 + $0x888] sm:$0xff] 0.0
        %426 = vst [vmem:[%s138 + $0x890] sm:$0xff] 0.0
        %427 = vst.msk [vmem:[%s138 + $0x898] sm:$0xff] %vm153, 0.0
        %428 = vst [vmem:[%s138 + $0x8a0] sm:$0xff] 0.0
        %429 = vst [vmem:[%s138 + $0x8a8] sm:$0xff] 0.0
        %430 = vst.msk [vmem:[%s138 + $0x8b0] sm:$0xff] %vm153, 0.0
        %431 = vst [vmem:[%s138 + $0x8b8] sm:$0xff] 0.0
        %432 = vst [vmem:[%s138 + $0x8c0] sm:$0xff] 0.0
        %433 = vst.msk [vmem:[%s138 + $0x8c8] sm:$0xff] %vm153, 0.0
        %434 = vst [vmem:[%s138 + $0x8d0] sm:$0xff] 0.0
        %435 = vst [vmem:[%s138 + $0x8d8] sm:$0xff] 0.0
        %436 = vst.msk [vmem:[%s138 + $0x8e0] sm:$0xff] %vm153, 0.0
        %437 = vst [vmem:[%s138 + $0x8e8] sm:$0xff] 0.0
        %438 = vst [vmem:[%s138 + $0x8f0] sm:$0xff] 0.0
        %439 = vst.msk [vmem:[%s138 + $0x8f8] sm:$0xff] %vm153, 0.0
        %440 = vst [vmem:[%s138 + $0x900] sm:$0xff] 0.0
        %441 = vst [vmem:[%s138 + $0x908] sm:$0xff] 0.0
        %442 = vst.msk [vmem:[%s138 + $0x910] sm:$0xff] %vm153, 0.0
        %443 = vst [vmem:[%s138 + $0x918] sm:$0xff] 0.0
        %444 = vst [vmem:[%s138 + $0x920] sm:$0xff] 0.0
        %445 = vst.msk [vmem:[%s138 + $0x928] sm:$0xff] %vm153, 0.0
        %446 = vst [vmem:[%s138 + $0x930] sm:$0xff] 0.0
        %447 = vst [vmem:[%s138 + $0x938] sm:$0xff] 0.0
        %448 = vst.msk [vmem:[%s138 + $0x940] sm:$0xff] %vm153, 0.0
        %449 = vst [vmem:[%s138 + $0x948] sm:$0xff] 0.0
        %450 = vst [vmem:[%s138 + $0x950] sm:$0xff] 0.0
        %451 = vst.msk [vmem:[%s138 + $0x958] sm:$0xff] %vm153, 0.0
        %452 = vst [vmem:[%s138 + $0x960] sm:$0xff] 0.0
        %453 = vst [vmem:[%s138 + $0x968] sm:$0xff] 0.0
        %454 = vst.msk [vmem:[%s138 + $0x970] sm:$0xff] %vm153, 0.0
        %455 = vst [vmem:[%s138 + $0x978] sm:$0xff] 0.0
        %456 = vst [vmem:[%s138 + $0x980] sm:$0xff] 0.0
        %457 = vst.msk [vmem:[%s138 + $0x988] sm:$0xff] %vm153, 0.0
        %458 = vst [vmem:[%s138 + $0x990] sm:$0xff] 0.0
        %459 = vst [vmem:[%s138 + $0x998] sm:$0xff] 0.0
        %460 = vst.msk [vmem:[%s138 + $0x9a0] sm:$0xff] %vm153, 0.0
        %461 = vst [vmem:[%s138 + $0x9a8] sm:$0xff] 0.0
        %462 = vst [vmem:[%s138 + $0x9b0] sm:$0xff] 0.0
        %463 = vst.msk [vmem:[%s138 + $0x9b8] sm:$0xff] %vm153, 0.0
        %464 = vst [vmem:[%s138 + $0x9c0] sm:$0xff] 0.0
        %465 = vst [vmem:[%s138 + $0x9c8] sm:$0xff] 0.0
        %466 = vst.msk [vmem:[%s138 + $0x9d0] sm:$0xff] %vm153, 0.0
        %467 = vst [vmem:[%s138 + $0x9d8] sm:$0xff] 0.0
        %468 = vst [vmem:[%s138 + $0x9e0] sm:$0xff] 0.0
        %469 = vst.msk [vmem:[%s138 + $0x9e8] sm:$0xff] %vm153, 0.0
        %470 = vst [vmem:[%s138 + $0x9f0] sm:$0xff] 0.0
        %471 = vst [vmem:[%s138 + $0x9f8] sm:$0xff] 0.0
        %472 = vst.msk [vmem:[%s138 + $0xa00] sm:$0xff] %vm153, 0.0
        %473 = vst [vmem:[%s138 + $0xa08] sm:$0xff] 0.0
        %474 = vst [vmem:[%s138 + $0xa10] sm:$0xff] 0.0
        %475 = vst.msk [vmem:[%s138 + $0xa18] sm:$0xff] %vm153, 0.0
        %476 = vst [vmem:[%s138 + $0xa20] sm:$0xff] 0.0
        %477 = vst [vmem:[%s138 + $0xa28] sm:$0xff] 0.0
        %478 = vst.msk [vmem:[%s138 + $0xa30] sm:$0xff] %vm153, 0.0
        %479 = vst [vmem:[%s138 + $0xa38] sm:$0xff] 0.0
        %480 = vst [vmem:[%s138 + $0xa40] sm:$0xff] 0.0
        %481 = vst.msk [vmem:[%s138 + $0xa48] sm:$0xff] %vm153, 0.0
        %482 = vst [vmem:[%s138 + $0xa50] sm:$0xff] 0.0
        %483 = vst [vmem:[%s138 + $0xa58] sm:$0xff] 0.0
        %484 = vst.msk [vmem:[%s138 + $0xa60] sm:$0xff] %vm153, 0.0
        %485 = vst [vmem:[%s138 + $0xa68] sm:$0xff] 0.0
        %486 = vst [vmem:[%s138 + $0xa70] sm:$0xff] 0.0
        %487 = vst.msk [vmem:[%s138 + $0xa78] sm:$0xff] %vm153, 0.0
        %488 = vst [vmem:[%s138 + $0xa80] sm:$0xff] 0.0
        %489 = vst [vmem:[%s138 + $0xa88] sm:$0xff] 0.0
        %490 = vst.msk [vmem:[%s138 + $0xa90] sm:$0xff] %vm153, 0.0
        %491 = vst [vmem:[%s138 + $0xa98] sm:$0xff] 0.0
        %492 = vst [vmem:[%s138 + $0xaa0] sm:$0xff] 0.0
        %493 = vst.msk [vmem:[%s138 + $0xaa8] sm:$0xff] %vm153, 0.0
        %494 = vst [vmem:[%s138 + $0xab0] sm:$0xff] 0.0
        %495 = vst [vmem:[%s138 + $0xab8] sm:$0xff] 0.0
        %496 = vst.msk [vmem:[%s138 + $0xac0] sm:$0xff] %vm153, 0.0
        %497 = vst [vmem:[%s138 + $0xac8] sm:$0xff] 0.0
        %498 = vst [vmem:[%s138 + $0xad0] sm:$0xff] 0.0
        %499 = vst.msk [vmem:[%s138 + $0xad8] sm:$0xff] %vm153, 0.0
        %500 = vst [vmem:[%s138 + $0xae0] sm:$0xff] 0.0
        %501 = vst [vmem:[%s138 + $0xae8] sm:$0xff] 0.0
        %502 = vst.msk [vmem:[%s138 + $0xaf0] sm:$0xff] %vm153, 0.0
        %503 = vst [vmem:[%s138 + $0xaf8] sm:$0xff] 0.0
        %504 = vst [vmem:[%s138 + $0xb00] sm:$0xff] 0.0
        %505 = vst.msk [vmem:[%s138 + $0xb08] sm:$0xff] %vm153, 0.0
        %506 = vst [vmem:[%s138 + $0xb10] sm:$0xff] 0.0
        %507 = vst [vmem:[%s138 + $0xb18] sm:$0xff] 0.0
        %508 = vst.msk [vmem:[%s138 + $0xb20] sm:$0xff] %vm153, 0.0
        %509 = vst [vmem:[%s138 + $0xb28] sm:$0xff] 0.0
        %510 = vst [vmem:[%s138 + $0xb30] sm:$0xff] 0.0
        %511 = vst.msk [vmem:[%s138 + $0xb38] sm:$0xff] %vm153, 0.0
        %512 = vst [vmem:[%s138 + $0xb40] sm:$0xff] 0.0
        %513 = vst [vmem:[%s138 + $0xb48] sm:$0xff] 0.0
        %514 = vst.msk [vmem:[%s138 + $0xb50] sm:$0xff] %vm153, 0.0
        %515 = vst [vmem:[%s138 + $0xb58] sm:$0xff] 0.0
        %516 = vst [vmem:[%s138 + $0xb60] sm:$0xff] 0.0
        %517 = vst.msk [vmem:[%s138 + $0xb68] sm:$0xff] %vm153, 0.0
        %518 = vst [vmem:[%s138 + $0xb70] sm:$0xff] 0.0
        %519 = vst [vmem:[%s138 + $0xb78] sm:$0xff] 0.0
        %520 = vst.msk [vmem:[%s138 + $0xb80] sm:$0xff] %vm153, 0.0
        %521 = vst [vmem:[%s138 + $0xb88] sm:$0xff] 0.0
        %522 = vst [vmem:[%s138 + $0xb90] sm:$0xff] 0.0
        %523 = vst.msk [vmem:[%s138 + $0xb98] sm:$0xff] %vm153, 0.0
        %524 = vst [vmem:[%s138 + $0xba0] sm:$0xff] 0.0
        %525 = vst [vmem:[%s138 + $0xba8] sm:$0xff] 0.0
        %526 = vst.msk [vmem:[%s138 + $0xbb0] sm:$0xff] %vm153, 0.0
        %527 = vst [vmem:[%s138 + $0xbb8] sm:$0xff] 0.0
        %528 = vst [vmem:[%s138 + $0xbc0] sm:$0xff] 0.0
        %529 = vst.msk [vmem:[%s138 + $0xbc8] sm:$0xff] %vm153, 0.0
        %530 = vst [vmem:[%s138 + $0xbd0] sm:$0xff] 0.0
        %531 = vst [vmem:[%s138 + $0xbd8] sm:$0xff] 0.0
        %532 = vst.msk [vmem:[%s138 + $0xbe0] sm:$0xff] %vm153, 0.0
        %533 = vst [vmem:[%s138 + $0xbe8] sm:$0xff] 0.0
        %534 = vst [vmem:[%s138 + $0xbf0] sm:$0xff] 0.0
        %535 = vst.msk [vmem:[%s138 + $0xbf8] sm:$0xff] %vm153, 0.0
        %536 = vst [vmem:[%s138 + $0xc00] sm:$0xff] 0.0
        %537 = vst [vmem:[%s138 + $0xc08] sm:$0xff] 0.0
        %538 = vst.msk [vmem:[%s138 + $0xc10] sm:$0xff] %vm153, 0.0
        %539 = vst [vmem:[%s138 + $0xc18] sm:$0xff] 0.0
        %540 = vst [vmem:[%s138 + $0xc20] sm:$0xff] 0.0
        %541 = vst.msk [vmem:[%s138 + $0xc28] sm:$0xff] %vm153, 0.0
        %542 = vst [vmem:[%s138 + $0xc30] sm:$0xff] 0.0
        %543 = vst [vmem:[%s138 + $0xc38] sm:$0xff] 0.0
        %544 = vst.msk [vmem:[%s138 + $0xc40] sm:$0xff] %vm153, 0.0
        %545 = vst [vmem:[%s138 + $0xc48] sm:$0xff] 0.0
        %546 = vst [vmem:[%s138 + $0xc50] sm:$0xff] 0.0
        %547 = vst.msk [vmem:[%s138 + $0xc58] sm:$0xff] %vm153, 0.0
        %548 = vst [vmem:[%s138 + $0xc60] sm:$0xff] 0.0
        %549 = vst [vmem:[%s138 + $0xc68] sm:$0xff] 0.0
        %550 = vst.msk [vmem:[%s138 + $0xc70] sm:$0xff] %vm153, 0.0
        %551 = vst [vmem:[%s138 + $0xc78] sm:$0xff] 0.0
        %552 = vst [vmem:[%s138 + $0xc80] sm:$0xff] 0.0
        %553 = vst.msk [vmem:[%s138 + $0xc88] sm:$0xff] %vm153, 0.0
        %554 = vst [vmem:[%s138 + $0xc90] sm:$0xff] 0.0
        %555 = vst [vmem:[%s138 + $0xc98] sm:$0xff] 0.0
        %556 = vst.msk [vmem:[%s138 + $0xca0] sm:$0xff] %vm153, 0.0
        %557 = vst [vmem:[%s138 + $0xca8] sm:$0xff] 0.0
        %558 = vst [vmem:[%s138 + $0xcb0] sm:$0xff] 0.0
        %559 = vst.msk [vmem:[%s138 + $0xcb8] sm:$0xff] %vm153, 0.0
        %560 = vst [vmem:[%s138 + $0xcc0] sm:$0xff] 0.0
        %561 = vst [vmem:[%s138 + $0xcc8] sm:$0xff] 0.0
        %562 = vst.msk [vmem:[%s138 + $0xcd0] sm:$0xff] %vm153, 0.0
        %563 = vst [vmem:[%s138 + $0xcd8] sm:$0xff] 0.0
        %564 = vst [vmem:[%s138 + $0xce0] sm:$0xff] 0.0
        %565 = vst.msk [vmem:[%s138 + $0xce8] sm:$0xff] %vm153, 0.0
        %566 = vst [vmem:[%s138 + $0xcf0] sm:$0xff] 0.0
        %567 = vst [vmem:[%s138 + $0xcf8] sm:$0xff] 0.0
        %568 = vst.msk [vmem:[%s138 + $0xd00] sm:$0xff] %vm153, 0.0
        %569 = vst [vmem:[%s138 + $0xd08] sm:$0xff] 0.0
        %570 = vst [vmem:[%s138 + $0xd10] sm:$0xff] 0.0
        %571 = vst.msk [vmem:[%s138 + $0xd18] sm:$0xff] %vm153, 0.0
        %572 = vst [vmem:[%s138 + $0xd20] sm:$0xff] 0.0
        %573 = vst [vmem:[%s138 + $0xd28] sm:$0xff] 0.0
        %574 = vst.msk [vmem:[%s138 + $0xd30] sm:$0xff] %vm153, 0.0
        %575 = vst [vmem:[%s138 + $0xd38] sm:$0xff] 0.0
        %576 = vst [vmem:[%s138 + $0xd40] sm:$0xff] 0.0
        %577 = vst.msk [vmem:[%s138 + $0xd48] sm:$0xff] %vm153, 0.0
        %578 = vst [vmem:[%s138 + $0xd50] sm:$0xff] 0.0
        %579 = vst [vmem:[%s138 + $0xd58] sm:$0xff] 0.0
        %580 = vst.msk [vmem:[%s138 + $0xd60] sm:$0xff] %vm153, 0.0
        %581 = vst [vmem:[%s138 + $0xd68] sm:$0xff] 0.0
        %582 = vst [vmem:[%s138 + $0xd70] sm:$0xff] 0.0
        %583 = vst.msk [vmem:[%s138 + $0xd78] sm:$0xff] %vm153, 0.0
        %584 = vst [vmem:[%s138 + $0xd80] sm:$0xff] 0.0
        %585 = vst [vmem:[%s138 + $0xd88] sm:$0xff] 0.0
        %586 = vst.msk [vmem:[%s138 + $0xd90] sm:$0xff] %vm153, 0.0
        %587 = vst [vmem:[%s138 + $0xd98] sm:$0xff] 0.0
        %588 = vst [vmem:[%s138 + $0xda0] sm:$0xff] 0.0
        %589 = vst.msk [vmem:[%s138 + $0xda8] sm:$0xff] %vm153, 0.0
        %590 = vst [vmem:[%s138 + $0xdb0] sm:$0xff] 0.0
        %591 = vst [vmem:[%s138 + $0xdb8] sm:$0xff] 0.0
        %592 = vst.msk [vmem:[%s138 + $0xdc0] sm:$0xff] %vm153, 0.0
        %593 = vst [vmem:[%s138 + $0xdc8] sm:$0xff] 0.0
        %594 = vst [vmem:[%s138 + $0xdd0] sm:$0xff] 0.0
        %595 = vst.msk [vmem:[%s138 + $0xdd8] sm:$0xff] %vm153, 0.0
        %596 = vst [vmem:[%s138 + $0xde0] sm:$0xff] 0.0
        %597 = vst [vmem:[%s138 + $0xde8] sm:$0xff] 0.0
        %598 = vst.msk [vmem:[%s138 + $0xdf0] sm:$0xff] %vm153, 0.0
        %599 = vst [vmem:[%s138 + $0xdf8] sm:$0xff] 0.0
        %600 = vst [vmem:[%s138 + $0xe00] sm:$0xff] 0.0
        %601 = vst.msk [vmem:[%s138 + $0xe08] sm:$0xff] %vm153, 0.0
        %602 = vst [vmem:[%s138 + $0xe10] sm:$0xff] 0.0
        %603 = vst [vmem:[%s138 + $0xe18] sm:$0xff] 0.0
        %604 = vst.msk [vmem:[%s138 + $0xe20] sm:$0xff] %vm153, 0.0
        %605 = vst [vmem:[%s138 + $0xe28] sm:$0xff] 0.0
        %606 = vst [vmem:[%s138 + $0xe30] sm:$0xff] 0.0
        %607 = vst.msk [vmem:[%s138 + $0xe38] sm:$0xff] %vm153, 0.0
        %608 = vst [vmem:[%s138 + $0xe40] sm:$0xff] 0.0
        %609 = vst [vmem:[%s138 + $0xe48] sm:$0xff] 0.0
        %610 = vst.msk [vmem:[%s138 + $0xe50] sm:$0xff] %vm153, 0.0
        %611 = vst [vmem:[%s138 + $0xe58] sm:$0xff] 0.0
        %612 = vst [vmem:[%s138 + $0xe60] sm:$0xff] 0.0
        %613 = vst.msk [vmem:[%s138 + $0xe68] sm:$0xff] %vm153, 0.0
        %614 = vst [vmem:[%s138 + $0xe70] sm:$0xff] 0.0
        %615 = vst [vmem:[%s138 + $0xe78] sm:$0xff] 0.0
        %616 = vst.msk [vmem:[%s138 + $0xe80] sm:$0xff] %vm153, 0.0
        %617 = vst [vmem:[%s138 + $0xe88] sm:$0xff] 0.0
        %618 = vst [vmem:[%s138 + $0xe90] sm:$0xff] 0.0
        %619 = vst.msk [vmem:[%s138 + $0xe98] sm:$0xff] %vm153, 0.0
        %620 = vst [vmem:[%s138 + $0xea0] sm:$0xff] 0.0
        %621 = vst [vmem:[%s138 + $0xea8] sm:$0xff] 0.0
        %622 = vst.msk [vmem:[%s138 + $0xeb0] sm:$0xff] %vm153, 0.0
        %623 = vst [vmem:[%s138 + $0xeb8] sm:$0xff] 0.0
        %624 = vst [vmem:[%s138 + $0xec0] sm:$0xff] 0.0
        %625 = vst.msk [vmem:[%s138 + $0xec8] sm:$0xff] %vm153, 0.0
        %626 = vst [vmem:[%s138 + $0xed0] sm:$0xff] 0.0
        %627 = vst [vmem:[%s138 + $0xed8] sm:$0xff] 0.0
        %628 = vst.msk [vmem:[%s138 + $0xee0] sm:$0xff] %vm153, 0.0
        %629 = vst [vmem:[%s138 + $0xee8] sm:$0xff] 0.0
        %630 = vst [vmem:[%s138 + $0xef0] sm:$0xff] 0.0
        %631 = vst.msk [vmem:[%s138 + $0xef8] sm:$0xff] %vm153, 0.0
        %632 = vst [vmem:[%s138 + $0xf00] sm:$0xff] 0.0
        %633 = vst [vmem:[%s138 + $0xf08] sm:$0xff] 0.0
        %634 = vst.msk [vmem:[%s138 + $0xf10] sm:$0xff] %vm153, 0.0
        %635 = vst [vmem:[%s138 + $0xf18] sm:$0xff] 0.0
        %636 = vst [vmem:[%s138 + $0xf20] sm:$0xff] 0.0
        %637 = vst.msk [vmem:[%s138 + $0xf28] sm:$0xff] %vm153, 0.0
        %638 = vst [vmem:[%s138 + $0xf30] sm:$0xff] 0.0
        %639 = vst [vmem:[%s138 + $0xf38] sm:$0xff] 0.0
        %640 = vst.msk [vmem:[%s138 + $0xf40] sm:$0xff] %vm153, 0.0
        %641 = vst [vmem:[%s138 + $0xf48] sm:$0xff] 0.0
        %642 = vst [vmem:[%s138 + $0xf50] sm:$0xff] 0.0
        %643 = vst.msk [vmem:[%s138 + $0xf58] sm:$0xff] %vm153, 0.0
        %644 = vst [vmem:[%s138 + $0xf60] sm:$0xff] 0.0
        %645 = vst [vmem:[%s138 + $0xf68] sm:$0xff] 0.0
        %646 = vst.msk [vmem:[%s138 + $0xf70] sm:$0xff] %vm153, 0.0
        %647 = vst [vmem:[%s138 + $0xf78] sm:$0xff] 0.0
        %648 = vst [vmem:[%s138 + $0xf80] sm:$0xff] 0.0
        %649 = vst.msk [vmem:[%s138 + $0xf88] sm:$0xff] %vm153, 0.0
        %650 = vst [vmem:[%s138 + $0xf90] sm:$0xff] 0.0
        %651 = vst [vmem:[%s138 + $0xf98] sm:$0xff] 0.0
        %652 = vst.msk [vmem:[%s138 + $0xfa0] sm:$0xff] %vm153, 0.0
        %653 = vst [vmem:[%s138 + $0xfa8] sm:$0xff] 0.0
        %654 = vst [vmem:[%s138 + $0xfb0] sm:$0xff] 0.0
        %655 = vst.msk [vmem:[%s138 + $0xfb8] sm:$0xff] %vm153, 0.0
        %656 = vst [vmem:[%s138 + $0xfc0] sm:$0xff] 0.0
        %657 = vst [vmem:[%s138 + $0xfc8] sm:$0xff] 0.0
        %658 = vst.msk [vmem:[%s138 + $0xfd0] sm:$0xff] %vm153, 0.0
        %659 = vst [vmem:[%s138 + $0xfd8] sm:$0xff] 0.0
        %660 = vst [vmem:[%s138 + $0xfe0] sm:$0xff] 0.0
        %661 = vst.msk [vmem:[%s138 + $0xfe8] sm:$0xff] %vm153, 0.0
        %662 = vst [vmem:[%s138 + $0xff0] sm:$0xff] 0.0
        %663 = vst [vmem:[%s138 + $0xff8] sm:$0xff] 0.0
        %664 = vst.msk [vmem:[%s138 + $0x1000] sm:$0xff] %vm153, 0.0
        %665 = vst [vmem:[%s138 + $0x1008] sm:$0xff] 0.0
        %666 = vst [vmem:[%s138 + $0x1010] sm:$0xff] 0.0
        %667 = vst.msk [vmem:[%s138 + $0x1018] sm:$0xff] %vm153, 0.0
        %668 = vst [vmem:[%s138 + $0x1020] sm:$0xff] 0.0
        %669 = vst [vmem:[%s138 + $0x1028] sm:$0xff] 0.0
        %670 = vst.msk [vmem:[%s138 + $0x1030] sm:$0xff] %vm153, 0.0
        %671 = vst [vmem:[%s138 + $0x1038] sm:$0xff] 0.0
        %672 = vst [vmem:[%s138 + $0x1040] sm:$0xff] 0.0
        %673 = vst.msk [vmem:[%s138 + $0x1048] sm:$0xff] %vm153, 0.0
        %674 = vst [vmem:[%s138 + $0x1050] sm:$0xff] 0.0
        %675 = vst [vmem:[%s138 + $0x1058] sm:$0xff] 0.0
        %676 = vst.msk [vmem:[%s138 + $0x1060] sm:$0xff] %vm153, 0.0
        %677 = vst [vmem:[%s138 + $0x1068] sm:$0xff] 0.0
        %678 = vst [vmem:[%s138 + $0x1070] sm:$0xff] 0.0
        %679 = vst.msk [vmem:[%s138 + $0x1078] sm:$0xff] %vm153, 0.0
        %680 = vst [vmem:[%s138 + $0x1080] sm:$0xff] 0.0
        %681 = vst [vmem:[%s138 + $0x1088] sm:$0xff] 0.0
        %682 = vst.msk [vmem:[%s138 + $0x1090] sm:$0xff] %vm153, 0.0
        %683 = vst [vmem:[%s138 + $0x1098] sm:$0xff] 0.0
        %684 = vst [vmem:[%s138 + $0x10a0] sm:$0xff] 0.0
        %685 = vst.msk [vmem:[%s138 + $0x10a8] sm:$0xff] %vm153, 0.0
        %686 = vst [vmem:[%s138 + $0x10b0] sm:$0xff] 0.0
        %687 = vst [vmem:[%s138 + $0x10b8] sm:$0xff] 0.0
        %688 = vst.msk [vmem:[%s138 + $0x10c0] sm:$0xff] %vm153, 0.0
        %689 = vst [vmem:[%s138 + $0x10c8] sm:$0xff] 0.0
        %690 = vst [vmem:[%s138 + $0x10d0] sm:$0xff] 0.0
        %691 = vst.msk [vmem:[%s138 + $0x10d8] sm:$0xff] %vm153, 0.0
        %692 = vst [vmem:[%s138 + $0x10e0] sm:$0xff] 0.0
        %693 = vst [vmem:[%s138 + $0x10e8] sm:$0xff] 0.0
        %694 = vst.msk [vmem:[%s138 + $0x10f0] sm:$0xff] %vm153, 0.0
        %695 = vst [vmem:[%s138 + $0x10f8] sm:$0xff] 0.0
        %696 = vst [vmem:[%s138 + $0x1100] sm:$0xff] 0.0
        %697 = vst.msk [vmem:[%s138 + $0x1108] sm:$0xff] %vm153, 0.0
        %698 = vst [vmem:[%s138 + $0x1110] sm:$0xff] 0.0
        %699 = vst [vmem:[%s138 + $0x1118] sm:$0xff] 0.0
        %700 = vst.msk [vmem:[%s138 + $0x1120] sm:$0xff] %vm153, 0.0
        %701 = vst [vmem:[%s138 + $0x1128] sm:$0xff] 0.0
        %702 = vst [vmem:[%s138 + $0x1130] sm:$0xff] 0.0
        %703 = vst.msk [vmem:[%s138 + $0x1138] sm:$0xff] %vm153, 0.0
        %704 = vst [vmem:[%s138 + $0x1140] sm:$0xff] 0.0
        %705 = vst [vmem:[%s138 + $0x1148] sm:$0xff] 0.0
        %706 = vst.msk [vmem:[%s138 + $0x1150] sm:$0xff] %vm153, 0.0
        %707 = vst [vmem:[%s138 + $0x1158] sm:$0xff] 0.0
        %708 = vst [vmem:[%s138 + $0x1160] sm:$0xff] 0.0
        %709 = vst.msk [vmem:[%s138 + $0x1168] sm:$0xff] %vm153, 0.0
        %710 = vst [vmem:[%s138 + $0x1170] sm:$0xff] 0.0
        %711 = vst [vmem:[%s138 + $0x1178] sm:$0xff] 0.0
        %712 = vst.msk [vmem:[%s138 + $0x1180] sm:$0xff] %vm153, 0.0
        %713 = vst [vmem:[%s138 + $0x1188] sm:$0xff] 0.0
        %714 = vst [vmem:[%s138 + $0x1190] sm:$0xff] 0.0
        %715 = vst.msk [vmem:[%s138 + $0x1198] sm:$0xff] %vm153, 0.0
        %716 = vst [vmem:[%s138 + $0x11a0] sm:$0xff] 0.0
        %717 = vst [vmem:[%s138 + $0x11a8] sm:$0xff] 0.0
        %718 = vst.msk [vmem:[%s138 + $0x11b0] sm:$0xff] %vm153, 0.0
        %719 = vst [vmem:[%s138 + $0x11b8] sm:$0xff] 0.0
        %720 = vst [vmem:[%s138 + $0x11c0] sm:$0xff] 0.0
        %721 = vst.msk [vmem:[%s138 + $0x11c8] sm:$0xff] %vm153, 0.0
        %722 = vst [vmem:[%s138 + $0x11d0] sm:$0xff] 0.0
        %723 = vst [vmem:[%s138 + $0x11d8] sm:$0xff] 0.0
        %724 = vst.msk [vmem:[%s138 + $0x11e0] sm:$0xff] %vm153, 0.0
        %725 = vst [vmem:[%s138 + $0x11e8] sm:$0xff] 0.0
        %726 = vst [vmem:[%s138 + $0x11f0] sm:$0xff] 0.0
        %727 = vst.msk [vmem:[%s138 + $0x11f8] sm:$0xff] %vm153, 0.0
        %728 = vst [vmem:[%s138 + $0x1200] sm:$0xff] 0.0
        %729 = vst [vmem:[%s138 + $0x1208] sm:$0xff] 0.0
        %730 = vst.msk [vmem:[%s138 + $0x1210] sm:$0xff] %vm153, 0.0
        %731 = vst [vmem:[%s138 + $0x1218] sm:$0xff] 0.0
        %732 = vst [vmem:[%s138 + $0x1220] sm:$0xff] 0.0
        %733 = vst.msk [vmem:[%s138 + $0x1228] sm:$0xff] %vm153, 0.0
        %734 = vst [vmem:[%s138 + $0x1230] sm:$0xff] 0.0
        %735 = vst [vmem:[%s138 + $0x1238] sm:$0xff] 0.0
        %736 = vst.msk [vmem:[%s138 + $0x1240] sm:$0xff] %vm153, 0.0
        %737 = vst [vmem:[%s138 + $0x1248] sm:$0xff] 0.0
        %738 = vst [vmem:[%s138 + $0x1250] sm:$0xff] 0.0
        %739 = vst.msk [vmem:[%s138 + $0x1258] sm:$0xff] %vm153, 0.0
        %740 = vst [vmem:[%s138 + $0x1260] sm:$0xff] 0.0
        %741 = vst [vmem:[%s138 + $0x1268] sm:$0xff] 0.0
        %742 = vst.msk [vmem:[%s138 + $0x1270] sm:$0xff] %vm153, 0.0
        %743 = vst [vmem:[%s138 + $0x1278] sm:$0xff] 0.0
        %744 = vst [vmem:[%s138 + $0x1280] sm:$0xff] 0.0
        %745 = vst.msk [vmem:[%s138 + $0x1288] sm:$0xff] %vm153, 0.0
        %746 = vst [vmem:[%s138 + $0x1290] sm:$0xff] 0.0
        %747 = vst [vmem:[%s138 + $0x1298] sm:$0xff] 0.0
        %748 = vst.msk [vmem:[%s138 + $0x12a0] sm:$0xff] %vm153, 0.0
        %749 = vst [vmem:[%s138 + $0x12a8] sm:$0xff] 0.0
        %750 = vst [vmem:[%s138 + $0x12b0] sm:$0xff] 0.0
        %751 = vst.msk [vmem:[%s138 + $0x12b8] sm:$0xff] %vm153, 0.0
        %752 = vst [vmem:[%s138 + $0x12c0] sm:$0xff] 0.0
        %753 = vst [vmem:[%s138 + $0x12c8] sm:$0xff] 0.0
        %754 = vst.msk [vmem:[%s138 + $0x12d0] sm:$0xff] %vm153, 0.0
        %755 = vst [vmem:[%s138 + $0x12d8] sm:$0xff] 0.0
        %756 = vst [vmem:[%s138 + $0x12e0] sm:$0xff] 0.0
        %757 = vst.msk [vmem:[%s138 + $0x12e8] sm:$0xff] %vm153, 0.0
        %758 = vst [vmem:[%s138 + $0x12f0] sm:$0xff] 0.0
        %759 = vst [vmem:[%s138 + $0x12f8] sm:$0xff] 0.0
        %760 = vst.msk [vmem:[%s138 + $0x1300] sm:$0xff] %vm153, 0.0
        %761 = vst [vmem:[%s138 + $0x1308] sm:$0xff] 0.0
        %762 = vst [vmem:[%s138 + $0x1310] sm:$0xff] 0.0
        %763 = vst.msk [vmem:[%s138 + $0x1318] sm:$0xff] %vm153, 0.0
        %764 = vst [vmem:[%s138 + $0x1320] sm:$0xff] 0.0
        %765 = vst [vmem:[%s138 + $0x1328] sm:$0xff] 0.0
        %766 = vst.msk [vmem:[%s138 + $0x1330] sm:$0xff] %vm153, 0.0
        %767 = vst [vmem:[%s138 + $0x1338] sm:$0xff] 0.0
        %768 = vst [vmem:[%s138 + $0x1340] sm:$0xff] 0.0
        %769 = vst.msk [vmem:[%s138 + $0x1348] sm:$0xff] %vm153, 0.0
        %770 = vst [vmem:[%s138 + $0x1350] sm:$0xff] 0.0
        %771 = vst [vmem:[%s138 + $0x1358] sm:$0xff] 0.0
        %772 = vst.msk [vmem:[%s138 + $0x1360] sm:$0xff] %vm153, 0.0
        %773 = vst [vmem:[%s138 + $0x1368] sm:$0xff] 0.0
        %774 = vst [vmem:[%s138 + $0x1370] sm:$0xff] 0.0
        %775 = vst.msk [vmem:[%s138 + $0x1378] sm:$0xff] %vm153, 0.0
        %776 = vst [vmem:[%s138 + $0x1380] sm:$0xff] 0.0
        %777 = vst [vmem:[%s138 + $0x1388] sm:$0xff] 0.0
        %778 = vst.msk [vmem:[%s138 + $0x1390] sm:$0xff] %vm153, 0.0
        %779 = vst [vmem:[%s138 + $0x1398] sm:$0xff] 0.0
        %780 = vst [vmem:[%s138 + $0x13a0] sm:$0xff] 0.0
        %781 = vst.msk [vmem:[%s138 + $0x13a8] sm:$0xff] %vm153, 0.0
        %782 = vst [vmem:[%s138 + $0x13b0] sm:$0xff] 0.0
        %783 = vst [vmem:[%s138 + $0x13b8] sm:$0xff] 0.0
        %784 = vst.msk [vmem:[%s138 + $0x13c0] sm:$0xff] %vm153, 0.0
        %785 = vst [vmem:[%s138 + $0x13c8] sm:$0xff] 0.0
        %786 = vst [vmem:[%s138 + $0x13d0] sm:$0xff] 0.0
        %787 = vst.msk [vmem:[%s138 + $0x13d8] sm:$0xff] %vm153, 0.0
        %788 = vst [vmem:[%s138 + $0x13e0] sm:$0xff] 0.0
        %789 = vst [vmem:[%s138 + $0x13e8] sm:$0xff] 0.0
        %790 = vst.msk [vmem:[%s138 + $0x13f0] sm:$0xff] %vm153, 0.0
        %791 = vst [vmem:[%s138 + $0x13f8] sm:$0xff] 0.0
        %792 = vst [vmem:[%s138 + $0x1400] sm:$0xff] 0.0
        %793 = vst.msk [vmem:[%s138 + $0x1408] sm:$0xff] %vm153, 0.0
        %794 = vst [vmem:[%s138 + $0x1410] sm:$0xff] 0.0
        %795 = vst [vmem:[%s138 + $0x1418] sm:$0xff] 0.0
        %796 = vst.msk [vmem:[%s138 + $0x1420] sm:$0xff] %vm153, 0.0
        %797 = vst [vmem:[%s138 + $0x1428] sm:$0xff] 0.0
        %798 = vst [vmem:[%s138 + $0x1430] sm:$0xff] 0.0
        %799 = vst.msk [vmem:[%s138 + $0x1438] sm:$0xff] %vm153, 0.0
        %800 = vst [vmem:[%s138 + $0x1440] sm:$0xff] 0.0
        %801 = vst [vmem:[%s138 + $0x1448] sm:$0xff] 0.0
        %802 = vst.msk [vmem:[%s138 + $0x1450] sm:$0xff] %vm153, 0.0
        %803 = vst [vmem:[%s138 + $0x1458] sm:$0xff] 0.0
        %804 = vst [vmem:[%s138 + $0x1460] sm:$0xff] 0.0
        %805 = vst.msk [vmem:[%s138 + $0x1468] sm:$0xff] %vm153, 0.0
        %806 = vst [vmem:[%s138 + $0x1470] sm:$0xff] 0.0
        %807 = vst [vmem:[%s138 + $0x1478] sm:$0xff] 0.0
        %808 = vst.msk [vmem:[%s138 + $0x1480] sm:$0xff] %vm153, 0.0
        %809 = vst [vmem:[%s138 + $0x1488] sm:$0xff] 0.0
        %810 = vst [vmem:[%s138 + $0x1490] sm:$0xff] 0.0
        %811 = vst.msk [vmem:[%s138 + $0x1498] sm:$0xff] %vm153, 0.0
        %812 = vst [vmem:[%s138 + $0x14a0] sm:$0xff] 0.0
        %813 = vst [vmem:[%s138 + $0x14a8] sm:$0xff] 0.0
        %814 = vst.msk [vmem:[%s138 + $0x14b0] sm:$0xff] %vm153, 0.0
        %815 = vst [vmem:[%s138 + $0x14b8] sm:$0xff] 0.0
        %816 = vst [vmem:[%s138 + $0x14c0] sm:$0xff] 0.0
        %817 = vst.msk [vmem:[%s138 + $0x14c8] sm:$0xff] %vm153, 0.0
        %818 = vst [vmem:[%s138 + $0x14d0] sm:$0xff] 0.0
        %819 = vst [vmem:[%s138 + $0x14d8] sm:$0xff] 0.0
        %820 = vst.msk [vmem:[%s138 + $0x14e0] sm:$0xff] %vm153, 0.0
        %821 = vst [vmem:[%s138 + $0x14e8] sm:$0xff] 0.0
        %822 = vst [vmem:[%s138 + $0x14f0] sm:$0xff] 0.0
        %823 = vst.msk [vmem:[%s138 + $0x14f8] sm:$0xff] %vm153, 0.0
        %824 = vst [vmem:[%s138 + $0x1500] sm:$0xff] 0.0
        %825 = vst [vmem:[%s138 + $0x1508] sm:$0xff] 0.0
        %826 = vst.msk [vmem:[%s138 + $0x1510] sm:$0xff] %vm153, 0.0
        %827 = vst [vmem:[%s138 + $0x1518] sm:$0xff] 0.0
        %828 = vst [vmem:[%s138 + $0x1520] sm:$0xff] 0.0
        %829 = vst.msk [vmem:[%s138 + $0x1528] sm:$0xff] %vm153, 0.0
        %830 = vst [vmem:[%s138 + $0x1530] sm:$0xff] 0.0
        %831 = vst [vmem:[%s138 + $0x1538] sm:$0xff] 0.0
        %832 = vst.msk [vmem:[%s138 + $0x1540] sm:$0xff] %vm153, 0.0
        %833 = vst [vmem:[%s138 + $0x1548] sm:$0xff] 0.0
        %834 = vst [vmem:[%s138 + $0x1550] sm:$0xff] 0.0
        %835 = vst.msk [vmem:[%s138 + $0x1558] sm:$0xff] %vm153, 0.0
        %836 = vst [vmem:[%s138 + $0x1560] sm:$0xff] 0.0
        %837 = vst [vmem:[%s138 + $0x1568] sm:$0xff] 0.0
        %838 = vst.msk [vmem:[%s138 + $0x1570] sm:$0xff] %vm153, 0.0
        %839 = vst [vmem:[%s138 + $0x1578] sm:$0xff] 0.0
        %840 = vst [vmem:[%s138 + $0x1580] sm:$0xff] 0.0
        %841 = vst.msk [vmem:[%s138 + $0x1588] sm:$0xff] %vm153, 0.0
        %842 = vst [vmem:[%s138 + $0x1590] sm:$0xff] 0.0
        %843 = vst [vmem:[%s138 + $0x1598] sm:$0xff] 0.0
        %844 = vst.msk [vmem:[%s138 + $0x15a0] sm:$0xff] %vm153, 0.0
        %845 = vst [vmem:[%s138 + $0x15a8] sm:$0xff] 0.0
        %846 = vst [vmem:[%s138 + $0x15b0] sm:$0xff] 0.0
        %847 = vst.msk [vmem:[%s138 + $0x15b8] sm:$0xff] %vm153, 0.0
        %848 = vst [vmem:[%s138 + $0x15c0] sm:$0xff] 0.0
        %849 = vst [vmem:[%s138 + $0x15c8] sm:$0xff] 0.0
        %850 = vst.msk [vmem:[%s138 + $0x15d0] sm:$0xff] %vm153, 0.0
        %851 = vst [vmem:[%s138 + $0x15d8] sm:$0xff] 0.0
        %852 = vst [vmem:[%s138 + $0x15e0] sm:$0xff] 0.0
        %853 = vst.msk [vmem:[%s138 + $0x15e8] sm:$0xff] %vm153, 0.0
        %854 = vst [vmem:[%s138 + $0x15f0] sm:$0xff] 0.0
        %855 = vst [vmem:[%s138 + $0x15f8] sm:$0xff] 0.0
        %856 = vst.msk [vmem:[%s138 + $0x1600] sm:$0xff] %vm153, 0.0
        %857 = vst [vmem:[%s138 + $0x1608] sm:$0xff] 0.0
        %858 = vst [vmem:[%s138 + $0x1610] sm:$0xff] 0.0
        %859 = vst.msk [vmem:[%s138 + $0x1618] sm:$0xff] %vm153, 0.0
        %860 = vst [vmem:[%s138 + $0x1620] sm:$0xff] 0.0
        %861 = vst [vmem:[%s138 + $0x1628] sm:$0xff] 0.0
        %862 = vst.msk [vmem:[%s138 + $0x1630] sm:$0xff] %vm153, 0.0
        %863 = vst [vmem:[%s138 + $0x1638] sm:$0xff] 0.0
        %864 = vst [vmem:[%s138 + $0x1640] sm:$0xff] 0.0
        %865 = vst.msk [vmem:[%s138 + $0x1648] sm:$0xff] %vm153, 0.0
        %866 = vst [vmem:[%s138 + $0x1650] sm:$0xff] 0.0
        %867 = vst [vmem:[%s138 + $0x1658] sm:$0xff] 0.0
        %868 = vst.msk [vmem:[%s138 + $0x1660] sm:$0xff] %vm153, 0.0
        %869 = vst [vmem:[%s138 + $0x1668] sm:$0xff] 0.0
        %870 = vst [vmem:[%s138 + $0x1670] sm:$0xff] 0.0
        %871 = vst.msk [vmem:[%s138 + $0x1678] sm:$0xff] %vm153, 0.0
        %872 = vst [vmem:[%s138 + $0x1680] sm:$0xff] 0.0
        %873 = vst [vmem:[%s138 + $0x1688] sm:$0xff] 0.0
        %874 = vst.msk [vmem:[%s138 + $0x1690] sm:$0xff] %vm153, 0.0
        %875 = vst [vmem:[%s138 + $0x1698] sm:$0xff] 0.0
        %876 = vst [vmem:[%s138 + $0x16a0] sm:$0xff] 0.0
        %877 = vst.msk [vmem:[%s138 + $0x16a8] sm:$0xff] %vm153, 0.0
        %878 = vst [vmem:[%s138 + $0x16b0] sm:$0xff] 0.0
        %879 = vst [vmem:[%s138 + $0x16b8] sm:$0xff] 0.0
        %880 = vst.msk [vmem:[%s138 + $0x16c0] sm:$0xff] %vm153, 0.0
        %881 = vst [vmem:[%s138 + $0x16c8] sm:$0xff] 0.0
        %882 = vst [vmem:[%s138 + $0x16d0] sm:$0xff] 0.0
        %883 = vst.msk [vmem:[%s138 + $0x16d8] sm:$0xff] %vm153, 0.0
        %884 = vst [vmem:[%s138 + $0x16e0] sm:$0xff] 0.0
        %885 = vst [vmem:[%s138 + $0x16e8] sm:$0xff] 0.0
        %886 = vst.msk [vmem:[%s138 + $0x16f0] sm:$0xff] %vm153, 0.0
        %887 = vst [vmem:[%s138 + $0x16f8] sm:$0xff] 0.0
        %888 = vst [vmem:[%s138 + $0x1700] sm:$0xff] 0.0
        %889 = vst.msk [vmem:[%s138 + $0x1708] sm:$0xff] %vm153, 0.0
        %890 = vst [vmem:[%s138 + $0x1710] sm:$0xff] 0.0
        %891 = vst [vmem:[%s138 + $0x1718] sm:$0xff] 0.0
        %892 = vst.msk [vmem:[%s138 + $0x1720] sm:$0xff] %vm153, 0.0
        %893 = vst [vmem:[%s138 + $0x1728] sm:$0xff] 0.0
        %894 = vst [vmem:[%s138 + $0x1730] sm:$0xff] 0.0
        %895 = vst.msk [vmem:[%s138 + $0x1738] sm:$0xff] %vm153, 0.0
        %896 = vst [vmem:[%s138 + $0x1740] sm:$0xff] 0.0
        %897 = vst [vmem:[%s138 + $0x1748] sm:$0xff] 0.0
        %898 = vst.msk [vmem:[%s138 + $0x1750] sm:$0xff] %vm153, 0.0
        %899 = vst [vmem:[%s138 + $0x1758] sm:$0xff] 0.0
        %900 = vst [vmem:[%s138 + $0x1760] sm:$0xff] 0.0
        %901 = vst.msk [vmem:[%s138 + $0x1768] sm:$0xff] %vm153, 0.0
        %902 = vst [vmem:[%s138 + $0x1770] sm:$0xff] 0.0
        %903 = vst [vmem:[%s138 + $0x1778] sm:$0xff] 0.0
        %904 = vst.msk [vmem:[%s138 + $0x1780] sm:$0xff] %vm153, 0.0
        %905 = vst [vmem:[%s138 + $0x1788] sm:$0xff] 0.0
        %906 = vst [vmem:[%s138 + $0x1790] sm:$0xff] 0.0
        %907 = vst.msk [vmem:[%s138 + $0x1798] sm:$0xff] %vm153, 0.0
        %908 = vst [vmem:[%s138 + $0x17a0] sm:$0xff] 0.0
        %909 = vst [vmem:[%s138 + $0x17a8] sm:$0xff] 0.0
        %910 = vst.msk [vmem:[%s138 + $0x17b0] sm:$0xff] %vm153, 0.0
        %911 = vst [vmem:[%s138 + $0x17b8] sm:$0xff] 0.0
        %912 = vst [vmem:[%s138 + $0x17c0] sm:$0xff] 0.0
        %913 = vst.msk [vmem:[%s138 + $0x17c8] sm:$0xff] %vm153, 0.0
        %914 = vst [vmem:[%s138 + $0x17d0] sm:$0xff] 0.0
        %915 = vst [vmem:[%s138 + $0x17d8] sm:$0xff] 0.0
        %916 = vst.msk [vmem:[%s138 + $0x17e0] sm:$0xff] %vm153, 0.0
        %917 = vst [vmem:[%s138 + $0x17e8] sm:$0xff] 0.0
        %918 = vst [vmem:[%s138 + $0x17f0] sm:$0xff] 0.0
        %919 = vst.msk [vmem:[%s138 + $0x17f8] sm:$0xff] %vm153, 0.0
        %v920 = vld [vmem:[%s121] sm:$0xff]
        %v921 = vld [vmem:[%s121 + $0x8] sm:$0xff]
        %v922 = vld [vmem:[%s121 + $0x10] sm:$0xff]
        %v923 = vld [vmem:[%s121 + $0x18] sm:$0xff]
        %v924 = vld [vmem:[%s121 + $0x20] sm:$0xff]
        %v925 = vld [vmem:[%s121 + $0x28] sm:$0xff]
        %v926 = vld [vmem:[%s121 + $0x30] sm:$0xff]
        %v927 = vld [vmem:[%s121 + $0x38] sm:$0xff]
        %v928 = vld [vmem:[%s121 + $0x40] sm:$0xff]
        %v929 = vld [vmem:[%s121 + $0x48] sm:$0xff]
        %v930 = vld [vmem:[%s121 + $0x50] sm:$0xff]
        %v931 = vld [vmem:[%s121 + $0x58] sm:$0xff]
        %v932 = vld [vmem:[%s121 + $0x60] sm:$0xff]
        %v933 = vld [vmem:[%s121 + $0x68] sm:$0xff]
        %v934 = vld [vmem:[%s121 + $0x70] sm:$0xff]
        %v935 = vld [vmem:[%s121 + $0x78] sm:$0xff]
        %v936 = vld [vmem:[%s121 + $0x80] sm:$0xff]
        %v937 = vld [vmem:[%s121 + $0x88] sm:$0xff]
        %v938 = vld [vmem:[%s121 + $0x90] sm:$0xff]
        %v939 = vld [vmem:[%s121 + $0x98] sm:$0xff]
        %v940 = vld [vmem:[%s121 + $0xa0] sm:$0xff]
        %v941 = vld [vmem:[%s121 + $0xa8] sm:$0xff]
        %v942 = vld [vmem:[%s121 + $0xb0] sm:$0xff]
        %v943 = vld [vmem:[%s121 + $0xb8] sm:$0xff]
        %v944 = vld [vmem:[%s121 + $0xc0] sm:$0xff]
        %v945 = vld [vmem:[%s121 + $0xc8] sm:$0xff]
        %v946 = vld [vmem:[%s121 + $0xd0] sm:$0xff]
        %v947 = vld [vmem:[%s121 + $0xd8] sm:$0xff]
        %v948 = vld [vmem:[%s121 + $0xe0] sm:$0xff]
        %v949 = vld [vmem:[%s121 + $0xe8] sm:$0xff]
        %v950 = vld [vmem:[%s121 + $0xf0] sm:$0xff]
        %v951 = vld [vmem:[%s121 + $0xf8] sm:$0xff]
        %v952 = vld [vmem:[%s121 + $0x100] sm:$0xff]
        %v953 = vld [vmem:[%s121 + $0x108] sm:$0xff]
        %v954 = vld [vmem:[%s121 + $0x110] sm:$0xff]
        %v955 = vld [vmem:[%s121 + $0x118] sm:$0xff]
        %v956 = vld [vmem:[%s121 + $0x120] sm:$0xff]
        %v957 = vld [vmem:[%s121 + $0x128] sm:$0xff]
        %v958 = vld [vmem:[%s121 + $0x130] sm:$0xff]
        %v959 = vld [vmem:[%s121 + $0x138] sm:$0xff]
        %v960 = vld [vmem:[%s121 + $0x140] sm:$0xff]
        %v961 = vld [vmem:[%s121 + $0x148] sm:$0xff]
        %v962 = vld [vmem:[%s121 + $0x150] sm:$0xff]
        %v963 = vld [vmem:[%s121 + $0x158] sm:$0xff]
        %v964 = vld [vmem:[%s121 + $0x160] sm:$0xff]
        %v965 = vld [vmem:[%s121 + $0x168] sm:$0xff]
        %v966 = vld [vmem:[%s121 + $0x170] sm:$0xff]
        %v967 = vld [vmem:[%s121 + $0x178] sm:$0xff]
        %v968 = vld [vmem:[%s121 + $0x180] sm:$0xff]
        %v969 = vld [vmem:[%s121 + $0x188] sm:$0xff]
        %v970 = vld [vmem:[%s121 + $0x190] sm:$0xff]
        %v971 = vld [vmem:[%s121 + $0x198] sm:$0xff]
        %v972 = vld [vmem:[%s121 + $0x1a0] sm:$0xff]
        %v973 = vld [vmem:[%s121 + $0x1a8] sm:$0xff]
        %v974 = vld [vmem:[%s121 + $0x1b0] sm:$0xff]
        %v975 = vld [vmem:[%s121 + $0x1b8] sm:$0xff]
        %v976 = vld [vmem:[%s121 + $0x1c0] sm:$0xff]
        %v977 = vld [vmem:[%s121 + $0x1c8] sm:$0xff]
        %v978 = vld [vmem:[%s121 + $0x1d0] sm:$0xff]
        %v979 = vld [vmem:[%s121 + $0x1d8] sm:$0xff]
        %v980 = vld [vmem:[%s121 + $0x1e0] sm:$0xff]
        %v981 = vld [vmem:[%s121 + $0x1e8] sm:$0xff]
        %v982 = vld [vmem:[%s121 + $0x1f0] sm:$0xff]
        %v983 = vld [vmem:[%s121 + $0x1f8] sm:$0xff]
        %v984 = vld [vmem:[%s121 + $0x200] sm:$0xff]
        %v985 = vld [vmem:[%s121 + $0x208] sm:$0xff]
        %v986 = vld [vmem:[%s121 + $0x210] sm:$0xff]
        %v987 = vld [vmem:[%s121 + $0x218] sm:$0xff]
        %v988 = vld [vmem:[%s121 + $0x220] sm:$0xff]
        %v989 = vld [vmem:[%s121 + $0x228] sm:$0xff]
        %v990 = vld [vmem:[%s121 + $0x230] sm:$0xff]
        %v991 = vld [vmem:[%s121 + $0x238] sm:$0xff]
        %v992 = vld [vmem:[%s121 + $0x240] sm:$0xff]
        %v993 = vld [vmem:[%s121 + $0x248] sm:$0xff]
        %v994 = vld [vmem:[%s121 + $0x250] sm:$0xff]
        %v995 = vld [vmem:[%s121 + $0x258] sm:$0xff]
        %v996 = vld [vmem:[%s121 + $0x260] sm:$0xff]
        %v997 = vld [vmem:[%s121 + $0x268] sm:$0xff]
        %v998 = vld [vmem:[%s121 + $0x270] sm:$0xff]
        %v999 = vld [vmem:[%s121 + $0x278] sm:$0xff]
        %v1000 = vld [vmem:[%s121 + $0x280] sm:$0xff]
        %v1001 = vld [vmem:[%s121 + $0x288] sm:$0xff]
        %v1002 = vld [vmem:[%s121 + $0x290] sm:$0xff]
        %v1003 = vld [vmem:[%s121 + $0x298] sm:$0xff]
        %v1004 = vld [vmem:[%s121 + $0x2a0] sm:$0xff]
        %v1005 = vld [vmem:[%s121 + $0x2a8] sm:$0xff]
        %v1006 = vld [vmem:[%s121 + $0x2b0] sm:$0xff]
        %v1007 = vld [vmem:[%s121 + $0x2b8] sm:$0xff]
        %v1008 = vld [vmem:[%s121 + $0x2c0] sm:$0xff]
        %v1009 = vld [vmem:[%s121 + $0x2c8] sm:$0xff]
        %v1010 = vld [vmem:[%s121 + $0x2d0] sm:$0xff]
        %v1011 = vld [vmem:[%s121 + $0x2d8] sm:$0xff]
        %v1012 = vld [vmem:[%s121 + $0x2e0] sm:$0xff]
        %v1013 = vld [vmem:[%s121 + $0x2e8] sm:$0xff]
        %v1014 = vld [vmem:[%s121 + $0x2f0] sm:$0xff]
        %v1015 = vld [vmem:[%s121 + $0x2f8] sm:$0xff]
        %v1016 = vld [vmem:[%s121 + $0x300] sm:$0xff]
        %v1017 = vld [vmem:[%s121 + $0x308] sm:$0xff]
        %v1018 = vld [vmem:[%s121 + $0x310] sm:$0xff]
        %v1019 = vld [vmem:[%s121 + $0x318] sm:$0xff]
        %v1020 = vld [vmem:[%s121 + $0x320] sm:$0xff]
        %v1021 = vld [vmem:[%s121 + $0x328] sm:$0xff]
        %v1022 = vld [vmem:[%s121 + $0x330] sm:$0xff]
        %v1023 = vld [vmem:[%s121 + $0x338] sm:$0xff]
        %v1024 = vld [vmem:[%s121 + $0x340] sm:$0xff]
        %v1025 = vld [vmem:[%s121 + $0x348] sm:$0xff]
        %v1026 = vld [vmem:[%s121 + $0x350] sm:$0xff]
        %v1027 = vld [vmem:[%s121 + $0x358] sm:$0xff]
        %v1028 = vld [vmem:[%s121 + $0x360] sm:$0xff]
        %v1029 = vld [vmem:[%s121 + $0x368] sm:$0xff]
        %v1030 = vld [vmem:[%s121 + $0x370] sm:$0xff]
        %v1031 = vld [vmem:[%s121 + $0x378] sm:$0xff]
        %v1032 = vld [vmem:[%s121 + $0x380] sm:$0xff]
        %v1033 = vld [vmem:[%s121 + $0x388] sm:$0xff]
        %v1034 = vld [vmem:[%s121 + $0x390] sm:$0xff]
        %v1035 = vld [vmem:[%s121 + $0x398] sm:$0xff]
        %v1036 = vld [vmem:[%s121 + $0x3a0] sm:$0xff]
        %v1037 = vld [vmem:[%s121 + $0x3a8] sm:$0xff]
        %v1038 = vld [vmem:[%s121 + $0x3b0] sm:$0xff]
        %v1039 = vld [vmem:[%s121 + $0x3b8] sm:$0xff]
        %v1040 = vld [vmem:[%s121 + $0x3c0] sm:$0xff]
        %v1041 = vld [vmem:[%s121 + $0x3c8] sm:$0xff]
        %v1042 = vld [vmem:[%s121 + $0x3d0] sm:$0xff]
        %v1043 = vld [vmem:[%s121 + $0x3d8] sm:$0xff]
        %v1044 = vld [vmem:[%s121 + $0x3e0] sm:$0xff]
        %v1045 = vld [vmem:[%s121 + $0x3e8] sm:$0xff]
        %v1046 = vld [vmem:[%s121 + $0x3f0] sm:$0xff]
        %v1047 = vld [vmem:[%s121 + $0x3f8] sm:$0xff]
        %v1048 = vld [vmem:[%s121 + $0x400] sm:$0xff]
        %v1049 = vld [vmem:[%s121 + $0x408] sm:$0xff]
        %v1050 = vld [vmem:[%s121 + $0x410] sm:$0xff]
        %v1051 = vld [vmem:[%s121 + $0x418] sm:$0xff]
        %v1052 = vld [vmem:[%s121 + $0x420] sm:$0xff]
        %v1053 = vld [vmem:[%s121 + $0x428] sm:$0xff]
        %v1054 = vld [vmem:[%s121 + $0x430] sm:$0xff]
        %v1055 = vld [vmem:[%s121 + $0x438] sm:$0xff]
        %v1056 = vld [vmem:[%s121 + $0x440] sm:$0xff]
        %v1057 = vld [vmem:[%s121 + $0x448] sm:$0xff]
        %v1058 = vld [vmem:[%s121 + $0x450] sm:$0xff]
        %v1059 = vld [vmem:[%s121 + $0x458] sm:$0xff]
        %v1060 = vld [vmem:[%s121 + $0x460] sm:$0xff]
        %v1061 = vld [vmem:[%s121 + $0x468] sm:$0xff]
        %v1062 = vld [vmem:[%s121 + $0x470] sm:$0xff]
        %v1063 = vld [vmem:[%s121 + $0x478] sm:$0xff]
        %v1064 = vld [vmem:[%s121 + $0x480] sm:$0xff]
        %v1065 = vld [vmem:[%s121 + $0x488] sm:$0xff]
        %v1066 = vld [vmem:[%s121 + $0x490] sm:$0xff]
        %v1067 = vld [vmem:[%s121 + $0x498] sm:$0xff]
        %v1068 = vld [vmem:[%s121 + $0x4a0] sm:$0xff]
        %v1069 = vld [vmem:[%s121 + $0x4a8] sm:$0xff]
        %v1070 = vld [vmem:[%s121 + $0x4b0] sm:$0xff]
        %v1071 = vld [vmem:[%s121 + $0x4b8] sm:$0xff]
        %v1072 = vld [vmem:[%s121 + $0x4c0] sm:$0xff]
        %v1073 = vld [vmem:[%s121 + $0x4c8] sm:$0xff]
        %v1074 = vld [vmem:[%s121 + $0x4d0] sm:$0xff]
        %v1075 = vld [vmem:[%s121 + $0x4d8] sm:$0xff]
        %v1076 = vld [vmem:[%s121 + $0x4e0] sm:$0xff]
        %v1077 = vld [vmem:[%s121 + $0x4e8] sm:$0xff]
        %v1078 = vld [vmem:[%s121 + $0x4f0] sm:$0xff]
        %v1079 = vld [vmem:[%s121 + $0x4f8] sm:$0xff]
        %v1080 = vld [vmem:[%s121 + $0x500] sm:$0xff]
        %v1081 = vld [vmem:[%s121 + $0x508] sm:$0xff]
        %v1082 = vld [vmem:[%s121 + $0x510] sm:$0xff]
        %v1083 = vld [vmem:[%s121 + $0x518] sm:$0xff]
        %v1084 = vld [vmem:[%s121 + $0x520] sm:$0xff]
        %v1085 = vld [vmem:[%s121 + $0x528] sm:$0xff]
        %v1086 = vld [vmem:[%s121 + $0x530] sm:$0xff]
        %v1087 = vld [vmem:[%s121 + $0x538] sm:$0xff]
        %v1088 = vld [vmem:[%s121 + $0x540] sm:$0xff]
        %v1089 = vld [vmem:[%s121 + $0x548] sm:$0xff]
        %v1090 = vld [vmem:[%s121 + $0x550] sm:$0xff]
        %v1091 = vld [vmem:[%s121 + $0x558] sm:$0xff]
        %v1092 = vld [vmem:[%s121 + $0x560] sm:$0xff]
        %v1093 = vld [vmem:[%s121 + $0x568] sm:$0xff]
        %v1094 = vld [vmem:[%s121 + $0x570] sm:$0xff]
        %v1095 = vld [vmem:[%s121 + $0x578] sm:$0xff]
        %v1096 = vld [vmem:[%s121 + $0x580] sm:$0xff]
        %v1097 = vld [vmem:[%s121 + $0x588] sm:$0xff]
        %v1098 = vld [vmem:[%s121 + $0x590] sm:$0xff]
        %v1099 = vld [vmem:[%s121 + $0x598] sm:$0xff]
        %v1100 = vld [vmem:[%s121 + $0x5a0] sm:$0xff]
        %v1101 = vld [vmem:[%s121 + $0x5a8] sm:$0xff]
        %v1102 = vld [vmem:[%s121 + $0x5b0] sm:$0xff]
        %v1103 = vld [vmem:[%s121 + $0x5b8] sm:$0xff]
        %v1104 = vld [vmem:[%s121 + $0x5c0] sm:$0xff]
        %v1105 = vld [vmem:[%s121 + $0x5c8] sm:$0xff]
        %v1106 = vld [vmem:[%s121 + $0x5d0] sm:$0xff]
        %v1107 = vld [vmem:[%s121 + $0x5d8] sm:$0xff]
        %v1108 = vld [vmem:[%s121 + $0x5e0] sm:$0xff]
        %v1109 = vld [vmem:[%s121 + $0x5e8] sm:$0xff]
        %v1110 = vld [vmem:[%s121 + $0x5f0] sm:$0xff]
        %v1111 = vld [vmem:[%s121 + $0x5f8] sm:$0xff]
        %v1112 = vld [vmem:[%s121 + $0x600] sm:$0xff]
        %v1113 = vld [vmem:[%s121 + $0x608] sm:$0xff]
        %v1114 = vld [vmem:[%s121 + $0x610] sm:$0xff]
        %v1115 = vld [vmem:[%s121 + $0x618] sm:$0xff]
        %v1116 = vld [vmem:[%s121 + $0x620] sm:$0xff]
        %v1117 = vld [vmem:[%s121 + $0x628] sm:$0xff]
        %v1118 = vld [vmem:[%s121 + $0x630] sm:$0xff]
        %v1119 = vld [vmem:[%s121 + $0x638] sm:$0xff]
        %v1120 = vld [vmem:[%s121 + $0x640] sm:$0xff]
        %v1121 = vld [vmem:[%s121 + $0x648] sm:$0xff]
        %v1122 = vld [vmem:[%s121 + $0x650] sm:$0xff]
        %v1123 = vld [vmem:[%s121 + $0x658] sm:$0xff]
        %v1124 = vld [vmem:[%s121 + $0x660] sm:$0xff]
        %v1125 = vld [vmem:[%s121 + $0x668] sm:$0xff]
        %v1126 = vld [vmem:[%s121 + $0x670] sm:$0xff]
        %v1127 = vld [vmem:[%s121 + $0x678] sm:$0xff]
        %v1128 = vld [vmem:[%s121 + $0x680] sm:$0xff]
        %v1129 = vld [vmem:[%s121 + $0x688] sm:$0xff]
        %v1130 = vld [vmem:[%s121 + $0x690] sm:$0xff]
        %v1131 = vld [vmem:[%s121 + $0x698] sm:$0xff]
        %v1132 = vld [vmem:[%s121 + $0x6a0] sm:$0xff]
        %v1133 = vld [vmem:[%s121 + $0x6a8] sm:$0xff]
        %v1134 = vld [vmem:[%s121 + $0x6b0] sm:$0xff]
        %v1135 = vld [vmem:[%s121 + $0x6b8] sm:$0xff]
        %v1136 = vld [vmem:[%s121 + $0x6c0] sm:$0xff]
        %v1137 = vld [vmem:[%s121 + $0x6c8] sm:$0xff]
        %v1138 = vld [vmem:[%s121 + $0x6d0] sm:$0xff]
        %v1139 = vld [vmem:[%s121 + $0x6d8] sm:$0xff]
        %v1140 = vld [vmem:[%s121 + $0x6e0] sm:$0xff]
        %v1141 = vld [vmem:[%s121 + $0x6e8] sm:$0xff]
        %v1142 = vld [vmem:[%s121 + $0x6f0] sm:$0xff]
        %v1143 = vld [vmem:[%s121 + $0x6f8] sm:$0xff]
        %v1144 = vld [vmem:[%s121 + $0x700] sm:$0xff]
        %v1145 = vld [vmem:[%s121 + $0x708] sm:$0xff]
        %v1146 = vld [vmem:[%s121 + $0x710] sm:$0xff]
        %v1147 = vld [vmem:[%s121 + $0x718] sm:$0xff]
        %v1148 = vld [vmem:[%s121 + $0x720] sm:$0xff]
        %v1149 = vld [vmem:[%s121 + $0x728] sm:$0xff]
        %v1150 = vld [vmem:[%s121 + $0x730] sm:$0xff]
        %v1151 = vld [vmem:[%s121 + $0x738] sm:$0xff]
        %v1152 = vld [vmem:[%s121 + $0x740] sm:$0xff]
        %v1153 = vld [vmem:[%s121 + $0x748] sm:$0xff]
        %v1154 = vld [vmem:[%s121 + $0x750] sm:$0xff]
        %v1155 = vld [vmem:[%s121 + $0x758] sm:$0xff]
        %v1156 = vld [vmem:[%s121 + $0x760] sm:$0xff]
        %v1157 = vld [vmem:[%s121 + $0x768] sm:$0xff]
        %v1158 = vld [vmem:[%s121 + $0x770] sm:$0xff]
        %v1159 = vld [vmem:[%s121 + $0x778] sm:$0xff]
        %v1160 = vld [vmem:[%s121 + $0x780] sm:$0xff]
        %v1161 = vld [vmem:[%s121 + $0x788] sm:$0xff]
        %v1162 = vld [vmem:[%s121 + $0x790] sm:$0xff]
        %v1163 = vld [vmem:[%s121 + $0x798] sm:$0xff]
        %v1164 = vld [vmem:[%s121 + $0x7a0] sm:$0xff]
        %v1165 = vld [vmem:[%s121 + $0x7a8] sm:$0xff]
        %v1166 = vld [vmem:[%s121 + $0x7b0] sm:$0xff]
        %v1167 = vld [vmem:[%s121 + $0x7b8] sm:$0xff]
        %v1168 = vld [vmem:[%s121 + $0x7c0] sm:$0xff]
        %v1169 = vld [vmem:[%s121 + $0x7c8] sm:$0xff]
        %v1170 = vld [vmem:[%s121 + $0x7d0] sm:$0xff]
        %v1171 = vld [vmem:[%s121 + $0x7d8] sm:$0xff]
        %v1172 = vld [vmem:[%s121 + $0x7e0] sm:$0xff]
        %v1173 = vld [vmem:[%s121 + $0x7e8] sm:$0xff]
        %v1174 = vld [vmem:[%s121 + $0x7f0] sm:$0xff]
        %v1175 = vld [vmem:[%s121 + $0x7f8] sm:$0xff]
        %v1176 = vld [vmem:[%s121 + $0x800] sm:$0xff]
        %v1177 = vld [vmem:[%s121 + $0x808] sm:$0xff]
        %v1178 = vld [vmem:[%s121 + $0x810] sm:$0xff]
        %v1179 = vld [vmem:[%s121 + $0x818] sm:$0xff]
        %v1180 = vld [vmem:[%s121 + $0x820] sm:$0xff]
        %v1181 = vld [vmem:[%s121 + $0x828] sm:$0xff]
        %v1182 = vld [vmem:[%s121 + $0x830] sm:$0xff]
        %v1183 = vld [vmem:[%s121 + $0x838] sm:$0xff]
        %v1184 = vld [vmem:[%s121 + $0x840] sm:$0xff]
        %v1185 = vld [vmem:[%s121 + $0x848] sm:$0xff]
        %v1186 = vld [vmem:[%s121 + $0x850] sm:$0xff]
        %v1187 = vld [vmem:[%s121 + $0x858] sm:$0xff]
        %v1188 = vld [vmem:[%s121 + $0x860] sm:$0xff]
        %v1189 = vld [vmem:[%s121 + $0x868] sm:$0xff]
        %v1190 = vld [vmem:[%s121 + $0x870] sm:$0xff]
        %v1191 = vld [vmem:[%s121 + $0x878] sm:$0xff]
        %v1192 = vld [vmem:[%s121 + $0x880] sm:$0xff]
        %v1193 = vld [vmem:[%s121 + $0x888] sm:$0xff]
        %v1194 = vld [vmem:[%s121 + $0x890] sm:$0xff]
        %v1195 = vld [vmem:[%s121 + $0x898] sm:$0xff]
        %v1196 = vld [vmem:[%s121 + $0x8a0] sm:$0xff]
        %v1197 = vld [vmem:[%s121 + $0x8a8] sm:$0xff]
        %v1198 = vld [vmem:[%s121 + $0x8b0] sm:$0xff]
        %v1199 = vld [vmem:[%s121 + $0x8b8] sm:$0xff]
        %v1200 = vld [vmem:[%s121 + $0x8c0] sm:$0xff]
        %v1201 = vld [vmem:[%s121 + $0x8c8] sm:$0xff]
        %v1202 = vld [vmem:[%s121 + $0x8d0] sm:$0xff]
        %v1203 = vld [vmem:[%s121 + $0x8d8] sm:$0xff]
        %v1204 = vld [vmem:[%s121 + $0x8e0] sm:$0xff]
        %v1205 = vld [vmem:[%s121 + $0x8e8] sm:$0xff]
        %v1206 = vld [vmem:[%s121 + $0x8f0] sm:$0xff]
        %v1207 = vld [vmem:[%s121 + $0x8f8] sm:$0xff]
        %v1208 = vld [vmem:[%s121 + $0x900] sm:$0xff]
        %v1209 = vld [vmem:[%s121 + $0x908] sm:$0xff]
        %v1210 = vld [vmem:[%s121 + $0x910] sm:$0xff]
        %v1211 = vld [vmem:[%s121 + $0x918] sm:$0xff]
        %v1212 = vld [vmem:[%s121 + $0x920] sm:$0xff]
        %v1213 = vld [vmem:[%s121 + $0x928] sm:$0xff]
        %v1214 = vld [vmem:[%s121 + $0x930] sm:$0xff]
        %v1215 = vld [vmem:[%s121 + $0x938] sm:$0xff]
        %v1216 = vld [vmem:[%s121 + $0x940] sm:$0xff]
        %v1217 = vld [vmem:[%s121 + $0x948] sm:$0xff]
        %v1218 = vld [vmem:[%s121 + $0x950] sm:$0xff]
        %v1219 = vld [vmem:[%s121 + $0x958] sm:$0xff]
        %v1220 = vld [vmem:[%s121 + $0x960] sm:$0xff]
        %v1221 = vld [vmem:[%s121 + $0x968] sm:$0xff]
        %v1222 = vld [vmem:[%s121 + $0x970] sm:$0xff]
        %v1223 = vld [vmem:[%s121 + $0x978] sm:$0xff]
        %v1224 = vld [vmem:[%s121 + $0x980] sm:$0xff]
        %v1225 = vld [vmem:[%s121 + $0x988] sm:$0xff]
        %v1226 = vld [vmem:[%s121 + $0x990] sm:$0xff]
        %v1227 = vld [vmem:[%s121 + $0x998] sm:$0xff]
        %v1228 = vld [vmem:[%s121 + $0x9a0] sm:$0xff]
        %v1229 = vld [vmem:[%s121 + $0x9a8] sm:$0xff]
        %v1230 = vld [vmem:[%s121 + $0x9b0] sm:$0xff]
        %v1231 = vld [vmem:[%s121 + $0x9b8] sm:$0xff]
        %v1232 = vld [vmem:[%s121 + $0x9c0] sm:$0xff]
        %v1233 = vld [vmem:[%s121 + $0x9c8] sm:$0xff]
        %v1234 = vld [vmem:[%s121 + $0x9d0] sm:$0xff]
        %v1235 = vld [vmem:[%s121 + $0x9d8] sm:$0xff]
        %v1236 = vld [vmem:[%s121 + $0x9e0] sm:$0xff]
        %v1237 = vld [vmem:[%s121 + $0x9e8] sm:$0xff]
        %v1238 = vld [vmem:[%s121 + $0x9f0] sm:$0xff]
        %v1239 = vld [vmem:[%s121 + $0x9f8] sm:$0xff]
        %v1240 = vld [vmem:[%s121 + $0xa00] sm:$0xff]
        %v1241 = vld [vmem:[%s121 + $0xa08] sm:$0xff]
        %v1242 = vld [vmem:[%s121 + $0xa10] sm:$0xff]
        %v1243 = vld [vmem:[%s121 + $0xa18] sm:$0xff]
        %v1244 = vld [vmem:[%s121 + $0xa20] sm:$0xff]
        %v1245 = vld [vmem:[%s121 + $0xa28] sm:$0xff]
        %v1246 = vld [vmem:[%s121 + $0xa30] sm:$0xff]
        %v1247 = vld [vmem:[%s121 + $0xa38] sm:$0xff]
        %v1248 = vld [vmem:[%s121 + $0xa40] sm:$0xff]
        %v1249 = vld [vmem:[%s121 + $0xa48] sm:$0xff]
        %v1250 = vld [vmem:[%s121 + $0xa50] sm:$0xff]
        %v1251 = vld [vmem:[%s121 + $0xa58] sm:$0xff]
        %v1252 = vld [vmem:[%s121 + $0xa60] sm:$0xff]
        %v1253 = vld [vmem:[%s121 + $0xa68] sm:$0xff]
        %v1254 = vld [vmem:[%s121 + $0xa70] sm:$0xff]
        %v1255 = vld [vmem:[%s121 + $0xa78] sm:$0xff]
        %v1256 = vld [vmem:[%s121 + $0xa80] sm:$0xff]
        %v1257 = vld [vmem:[%s121 + $0xa88] sm:$0xff]
        %v1258 = vld [vmem:[%s121 + $0xa90] sm:$0xff]
        %v1259 = vld [vmem:[%s121 + $0xa98] sm:$0xff]
        %v1260 = vld [vmem:[%s121 + $0xaa0] sm:$0xff]
        %v1261 = vld [vmem:[%s121 + $0xaa8] sm:$0xff]
        %v1262 = vld [vmem:[%s121 + $0xab0] sm:$0xff]
        %v1263 = vld [vmem:[%s121 + $0xab8] sm:$0xff]
        %v1264 = vld [vmem:[%s121 + $0xac0] sm:$0xff]
        %v1265 = vld [vmem:[%s121 + $0xac8] sm:$0xff]
        %v1266 = vld [vmem:[%s121 + $0xad0] sm:$0xff]
        %v1267 = vld [vmem:[%s121 + $0xad8] sm:$0xff]
        %v1268 = vld [vmem:[%s121 + $0xae0] sm:$0xff]
        %v1269 = vld [vmem:[%s121 + $0xae8] sm:$0xff]
        %v1270 = vld [vmem:[%s121 + $0xaf0] sm:$0xff]
        %v1271 = vld [vmem:[%s121 + $0xaf8] sm:$0xff]
        %v1272 = vld [vmem:[%s121 + $0xb00] sm:$0xff]
        %v1273 = vld [vmem:[%s121 + $0xb08] sm:$0xff]
        %v1274 = vld [vmem:[%s121 + $0xb10] sm:$0xff]
        %v1275 = vld [vmem:[%s121 + $0xb18] sm:$0xff]
        %v1276 = vld [vmem:[%s121 + $0xb20] sm:$0xff]
        %v1277 = vld [vmem:[%s121 + $0xb28] sm:$0xff]
        %v1278 = vld [vmem:[%s121 + $0xb30] sm:$0xff]
        %v1279 = vld [vmem:[%s121 + $0xb38] sm:$0xff]
        %v1280 = vld [vmem:[%s121 + $0xb40] sm:$0xff]
        %v1281 = vld [vmem:[%s121 + $0xb48] sm:$0xff]
        %v1282 = vld [vmem:[%s121 + $0xb50] sm:$0xff]
        %v1283 = vld [vmem:[%s121 + $0xb58] sm:$0xff]
        %v1284 = vld [vmem:[%s121 + $0xb60] sm:$0xff]
        %v1285 = vld [vmem:[%s121 + $0xb68] sm:$0xff]
        %v1286 = vld [vmem:[%s121 + $0xb70] sm:$0xff]
        %v1287 = vld [vmem:[%s121 + $0xb78] sm:$0xff]
        %v1288 = vld [vmem:[%s121 + $0xb80] sm:$0xff]
        %v1289 = vld [vmem:[%s121 + $0xb88] sm:$0xff]
        %v1290 = vld [vmem:[%s121 + $0xb90] sm:$0xff]
        %v1291 = vld [vmem:[%s121 + $0xb98] sm:$0xff]
        %v1292 = vld [vmem:[%s121 + $0xba0] sm:$0xff]
        %v1293 = vld [vmem:[%s121 + $0xba8] sm:$0xff]
        %v1294 = vld [vmem:[%s121 + $0xbb0] sm:$0xff]
        %v1295 = vld [vmem:[%s121 + $0xbb8] sm:$0xff]
        %v1296 = vld [vmem:[%s121 + $0xbc0] sm:$0xff]
        %v1297 = vld [vmem:[%s121 + $0xbc8] sm:$0xff]
        %v1298 = vld [vmem:[%s121 + $0xbd0] sm:$0xff]
        %v1299 = vld [vmem:[%s121 + $0xbd8] sm:$0xff]
        %v1300 = vld [vmem:[%s121 + $0xbe0] sm:$0xff]
        %v1301 = vld [vmem:[%s121 + $0xbe8] sm:$0xff]
        %v1302 = vld [vmem:[%s121 + $0xbf0] sm:$0xff]
        %v1303 = vld [vmem:[%s121 + $0xbf8] sm:$0xff]
        %v1304 = vld [vmem:[%s121 + $0xc00] sm:$0xff]
        %v1305 = vld [vmem:[%s121 + $0xc08] sm:$0xff]
        %v1306 = vld [vmem:[%s121 + $0xc10] sm:$0xff]
        %v1307 = vld [vmem:[%s121 + $0xc18] sm:$0xff]
        %v1308 = vld [vmem:[%s121 + $0xc20] sm:$0xff]
        %v1309 = vld [vmem:[%s121 + $0xc28] sm:$0xff]
        %v1310 = vld [vmem:[%s121 + $0xc30] sm:$0xff]
        %v1311 = vld [vmem:[%s121 + $0xc38] sm:$0xff]
        %v1312 = vld [vmem:[%s121 + $0xc40] sm:$0xff]
        %v1313 = vld [vmem:[%s121 + $0xc48] sm:$0xff]
        %v1314 = vld [vmem:[%s121 + $0xc50] sm:$0xff]
        %v1315 = vld [vmem:[%s121 + $0xc58] sm:$0xff]
        %v1316 = vld [vmem:[%s121 + $0xc60] sm:$0xff]
        %v1317 = vld [vmem:[%s121 + $0xc68] sm:$0xff]
        %v1318 = vld [vmem:[%s121 + $0xc70] sm:$0xff]
        %v1319 = vld [vmem:[%s121 + $0xc78] sm:$0xff]
        %v1320 = vld [vmem:[%s121 + $0xc80] sm:$0xff]
        %v1321 = vld [vmem:[%s121 + $0xc88] sm:$0xff]
        %v1322 = vld [vmem:[%s121 + $0xc90] sm:$0xff]
        %v1323 = vld [vmem:[%s121 + $0xc98] sm:$0xff]
        %v1324 = vld [vmem:[%s121 + $0xca0] sm:$0xff]
        %v1325 = vld [vmem:[%s121 + $0xca8] sm:$0xff]
        %v1326 = vld [vmem:[%s121 + $0xcb0] sm:$0xff]
        %v1327 = vld [vmem:[%s121 + $0xcb8] sm:$0xff]
        %v1328 = vld [vmem:[%s121 + $0xcc0] sm:$0xff]
        %v1329 = vld [vmem:[%s121 + $0xcc8] sm:$0xff]
        %v1330 = vld [vmem:[%s121 + $0xcd0] sm:$0xff]
        %v1331 = vld [vmem:[%s121 + $0xcd8] sm:$0xff]
        %v1332 = vld [vmem:[%s121 + $0xce0] sm:$0xff]
        %v1333 = vld [vmem:[%s121 + $0xce8] sm:$0xff]
        %v1334 = vld [vmem:[%s121 + $0xcf0] sm:$0xff]
        %v1335 = vld [vmem:[%s121 + $0xcf8] sm:$0xff]
        %v1336 = vld [vmem:[%s121 + $0xd00] sm:$0xff]
        %v1337 = vld [vmem:[%s121 + $0xd08] sm:$0xff]
        %v1338 = vld [vmem:[%s121 + $0xd10] sm:$0xff]
        %v1339 = vld [vmem:[%s121 + $0xd18] sm:$0xff]
        %v1340 = vld [vmem:[%s121 + $0xd20] sm:$0xff]
        %v1341 = vld [vmem:[%s121 + $0xd28] sm:$0xff]
        %v1342 = vld [vmem:[%s121 + $0xd30] sm:$0xff]
        %v1343 = vld [vmem:[%s121 + $0xd38] sm:$0xff]
        %v1344 = vld [vmem:[%s121 + $0xd40] sm:$0xff]
        %v1345 = vld [vmem:[%s121 + $0xd48] sm:$0xff]
        %v1346 = vld [vmem:[%s121 + $0xd50] sm:$0xff]
        %v1347 = vld [vmem:[%s121 + $0xd58] sm:$0xff]
        %v1348 = vld [vmem:[%s121 + $0xd60] sm:$0xff]
        %v1349 = vld [vmem:[%s121 + $0xd68] sm:$0xff]
        %v1350 = vld [vmem:[%s121 + $0xd70] sm:$0xff]
        %v1351 = vld [vmem:[%s121 + $0xd78] sm:$0xff]
        %v1352 = vld [vmem:[%s121 + $0xd80] sm:$0xff]
        %v1353 = vld [vmem:[%s121 + $0xd88] sm:$0xff]
        %v1354 = vld [vmem:[%s121 + $0xd90] sm:$0xff]
        %v1355 = vld [vmem:[%s121 + $0xd98] sm:$0xff]
        %v1356 = vld [vmem:[%s121 + $0xda0] sm:$0xff]
        %v1357 = vld [vmem:[%s121 + $0xda8] sm:$0xff]
        %v1358 = vld [vmem:[%s121 + $0xdb0] sm:$0xff]
        %v1359 = vld [vmem:[%s121 + $0xdb8] sm:$0xff]
        %v1360 = vld [vmem:[%s121 + $0xdc0] sm:$0xff]
        %v1361 = vld [vmem:[%s121 + $0xdc8] sm:$0xff]
        %v1362 = vld [vmem:[%s121 + $0xdd0] sm:$0xff]
        %v1363 = vld [vmem:[%s121 + $0xdd8] sm:$0xff]
        %v1364 = vld [vmem:[%s121 + $0xde0] sm:$0xff]
        %v1365 = vld [vmem:[%s121 + $0xde8] sm:$0xff]
        %v1366 = vld [vmem:[%s121 + $0xdf0] sm:$0xff]
        %v1367 = vld [vmem:[%s121 + $0xdf8] sm:$0xff]
        %v1368 = vld [vmem:[%s121 + $0xe00] sm:$0xff]
        %v1369 = vld [vmem:[%s121 + $0xe08] sm:$0xff]
        %v1370 = vld [vmem:[%s121 + $0xe10] sm:$0xff]
        %v1371 = vld [vmem:[%s121 + $0xe18] sm:$0xff]
        %v1372 = vld [vmem:[%s121 + $0xe20] sm:$0xff]
        %v1373 = vld [vmem:[%s121 + $0xe28] sm:$0xff]
        %v1374 = vld [vmem:[%s121 + $0xe30] sm:$0xff]
        %v1375 = vld [vmem:[%s121 + $0xe38] sm:$0xff]
        %v1376 = vld [vmem:[%s121 + $0xe40] sm:$0xff]
        %v1377 = vld [vmem:[%s121 + $0xe48] sm:$0xff]
        %v1378 = vld [vmem:[%s121 + $0xe50] sm:$0xff]
        %v1379 = vld [vmem:[%s121 + $0xe58] sm:$0xff]
        %v1380 = vld [vmem:[%s121 + $0xe60] sm:$0xff]
        %v1381 = vld [vmem:[%s121 + $0xe68] sm:$0xff]
        %v1382 = vld [vmem:[%s121 + $0xe70] sm:$0xff]
        %v1383 = vld [vmem:[%s121 + $0xe78] sm:$0xff]
        %v1384 = vld [vmem:[%s121 + $0xe80] sm:$0xff]
        %v1385 = vld [vmem:[%s121 + $0xe88] sm:$0xff]
        %v1386 = vld [vmem:[%s121 + $0xe90] sm:$0xff]
        %v1387 = vld [vmem:[%s121 + $0xe98] sm:$0xff]
        %v1388 = vld [vmem:[%s121 + $0xea0] sm:$0xff]
        %v1389 = vld [vmem:[%s121 + $0xea8] sm:$0xff]
        %v1390 = vld [vmem:[%s121 + $0xeb0] sm:$0xff]
        %v1391 = vld [vmem:[%s121 + $0xeb8] sm:$0xff]
        %v1392 = vld [vmem:[%s121 + $0xec0] sm:$0xff]
        %v1393 = vld [vmem:[%s121 + $0xec8] sm:$0xff]
        %v1394 = vld [vmem:[%s121 + $0xed0] sm:$0xff]
        %v1395 = vld [vmem:[%s121 + $0xed8] sm:$0xff]
        %v1396 = vld [vmem:[%s121 + $0xee0] sm:$0xff]
        %v1397 = vld [vmem:[%s121 + $0xee8] sm:$0xff]
        %v1398 = vld [vmem:[%s121 + $0xef0] sm:$0xff]
        %v1399 = vld [vmem:[%s121 + $0xef8] sm:$0xff]
        %v1400 = vld [vmem:[%s121 + $0xf00] sm:$0xff]
        %v1401 = vld [vmem:[%s121 + $0xf08] sm:$0xff]
        %v1402 = vld [vmem:[%s121 + $0xf10] sm:$0xff]
        %v1403 = vld [vmem:[%s121 + $0xf18] sm:$0xff]
        %v1404 = vld [vmem:[%s121 + $0xf20] sm:$0xff]
        %v1405 = vld [vmem:[%s121 + $0xf28] sm:$0xff]
        %v1406 = vld [vmem:[%s121 + $0xf30] sm:$0xff]
        %v1407 = vld [vmem:[%s121 + $0xf38] sm:$0xff]
        %v1408 = vld [vmem:[%s121 + $0xf40] sm:$0xff]
        %v1409 = vld [vmem:[%s121 + $0xf48] sm:$0xff]
        %v1410 = vld [vmem:[%s121 + $0xf50] sm:$0xff]
        %v1411 = vld [vmem:[%s121 + $0xf58] sm:$0xff]
        %v1412 = vld [vmem:[%s121 + $0xf60] sm:$0xff]
        %v1413 = vld [vmem:[%s121 + $0xf68] sm:$0xff]
        %v1414 = vld [vmem:[%s121 + $0xf70] sm:$0xff]
        %v1415 = vld [vmem:[%s121 + $0xf78] sm:$0xff]
        %v1416 = vld [vmem:[%s121 + $0xf80] sm:$0xff]
        %v1417 = vld [vmem:[%s121 + $0xf88] sm:$0xff]
        %v1418 = vld [vmem:[%s121 + $0xf90] sm:$0xff]
        %v1419 = vld [vmem:[%s121 + $0xf98] sm:$0xff]
        %v1420 = vld [vmem:[%s121 + $0xfa0] sm:$0xff]
        %v1421 = vld [vmem:[%s121 + $0xfa8] sm:$0xff]
        %v1422 = vld [vmem:[%s121 + $0xfb0] sm:$0xff]
        %v1423 = vld [vmem:[%s121 + $0xfb8] sm:$0xff]
        %v1424 = vld [vmem:[%s121 + $0xfc0] sm:$0xff]
        %v1425 = vld [vmem:[%s121 + $0xfc8] sm:$0xff]
        %v1426 = vld [vmem:[%s121 + $0xfd0] sm:$0xff]
        %v1427 = vld [vmem:[%s121 + $0xfd8] sm:$0xff]
        %v1428 = vld [vmem:[%s121 + $0xfe0] sm:$0xff]
        %v1429 = vld [vmem:[%s121 + $0xfe8] sm:$0xff]
        %v1430 = vld [vmem:[%s121 + $0xff0] sm:$0xff]
        %v1431 = vld [vmem:[%s121 + $0xff8] sm:$0xff]
        %1432 = vst [vmem:[%s138] sm:$0xff] %v920
        %1433 = vst [vmem:[%s138 + $0x8] sm:$0xff] %v921
        %1434 = vst [vmem:[%s138 + $0x18] sm:$0xff] %v922
        %1435 = vst [vmem:[%s138 + $0x20] sm:$0xff] %v923
        %1436 = vst [vmem:[%s138 + $0x30] sm:$0xff] %v924
        %1437 = vst [vmem:[%s138 + $0x38] sm:$0xff] %v925
        %1438 = vst [vmem:[%s138 + $0x48] sm:$0xff] %v926
        %1439 = vst [vmem:[%s138 + $0x50] sm:$0xff] %v927
        %1440 = vst [vmem:[%s138 + $0x60] sm:$0xff] %v928
        %1441 = vst [vmem:[%s138 + $0x68] sm:$0xff] %v929
        %1442 = vst [vmem:[%s138 + $0x78] sm:$0xff] %v930
        %1443 = vst [vmem:[%s138 + $0x80] sm:$0xff] %v931
        %1444 = vst [vmem:[%s138 + $0x90] sm:$0xff] %v932
        %1445 = vst [vmem:[%s138 + $0x98] sm:$0xff] %v933
        %1446 = vst [vmem:[%s138 + $0xa8] sm:$0xff] %v934
        %1447 = vst [vmem:[%s138 + $0xb0] sm:$0xff] %v935
        %1448 = vst [vmem:[%s138 + $0xc0] sm:$0xff] %v936
        %1449 = vst [vmem:[%s138 + $0xc8] sm:$0xff] %v937
        %1450 = vst [vmem:[%s138 + $0xd8] sm:$0xff] %v938
        %1451 = vst [vmem:[%s138 + $0xe0] sm:$0xff] %v939
        %1452 = vst [vmem:[%s138 + $0xf0] sm:$0xff] %v940
        %1453 = vst [vmem:[%s138 + $0xf8] sm:$0xff] %v941
        %1454 = vst [vmem:[%s138 + $0x108] sm:$0xff] %v942
        %1455 = vst [vmem:[%s138 + $0x110] sm:$0xff] %v943
        %1456 = vst [vmem:[%s138 + $0x120] sm:$0xff] %v944
        %1457 = vst [vmem:[%s138 + $0x128] sm:$0xff] %v945
        %1458 = vst [vmem:[%s138 + $0x138] sm:$0xff] %v946
        %1459 = vst [vmem:[%s138 + $0x140] sm:$0xff] %v947
        %1460 = vst [vmem:[%s138 + $0x150] sm:$0xff] %v948
        %1461 = vst [vmem:[%s138 + $0x158] sm:$0xff] %v949
        %1462 = vst [vmem:[%s138 + $0x168] sm:$0xff] %v950
        %1463 = vst [vmem:[%s138 + $0x170] sm:$0xff] %v951
        %1464 = vst [vmem:[%s138 + $0x180] sm:$0xff] %v952
        %1465 = vst [vmem:[%s138 + $0x188] sm:$0xff] %v953
        %1466 = vst [vmem:[%s138 + $0x198] sm:$0xff] %v954
        %1467 = vst [vmem:[%s138 + $0x1a0] sm:$0xff] %v955
        %1468 = vst [vmem:[%s138 + $0x1b0] sm:$0xff] %v956
        %1469 = vst [vmem:[%s138 + $0x1b8] sm:$0xff] %v957
        %1470 = vst [vmem:[%s138 + $0x1c8] sm:$0xff] %v958
        %1471 = vst [vmem:[%s138 + $0x1d0] sm:$0xff] %v959
        %1472 = vst [vmem:[%s138 + $0x1e0] sm:$0xff] %v960
        %1473 = vst [vmem:[%s138 + $0x1e8] sm:$0xff] %v961
        %1474 = vst [vmem:[%s138 + $0x1f8] sm:$0xff] %v962
        %1475 = vst [vmem:[%s138 + $0x200] sm:$0xff] %v963
        %1476 = vst [vmem:[%s138 + $0x210] sm:$0xff] %v964
        %1477 = vst [vmem:[%s138 + $0x218] sm:$0xff] %v965
        %1478 = vst [vmem:[%s138 + $0x228] sm:$0xff] %v966
        %1479 = vst [vmem:[%s138 + $0x230] sm:$0xff] %v967
        %1480 = vst [vmem:[%s138 + $0x240] sm:$0xff] %v968
        %1481 = vst [vmem:[%s138 + $0x248] sm:$0xff] %v969
        %1482 = vst [vmem:[%s138 + $0x258] sm:$0xff] %v970
        %1483 = vst [vmem:[%s138 + $0x260] sm:$0xff] %v971
        %1484 = vst [vmem:[%s138 + $0x270] sm:$0xff] %v972
        %1485 = vst [vmem:[%s138 + $0x278] sm:$0xff] %v973
        %1486 = vst [vmem:[%s138 + $0x288] sm:$0xff] %v974
        %1487 = vst [vmem:[%s138 + $0x290] sm:$0xff] %v975
        %1488 = vst [vmem:[%s138 + $0x2a0] sm:$0xff] %v976
        %1489 = vst [vmem:[%s138 + $0x2a8] sm:$0xff] %v977
        %1490 = vst [vmem:[%s138 + $0x2b8] sm:$0xff] %v978
        %1491 = vst [vmem:[%s138 + $0x2c0] sm:$0xff] %v979
        %1492 = vst [vmem:[%s138 + $0x2d0] sm:$0xff] %v980
        %1493 = vst [vmem:[%s138 + $0x2d8] sm:$0xff] %v981
        %1494 = vst [vmem:[%s138 + $0x2e8] sm:$0xff] %v982
        %1495 = vst [vmem:[%s138 + $0x2f0] sm:$0xff] %v983
        %1496 = vst [vmem:[%s138 + $0x300] sm:$0xff] %v984
        %1497 = vst [vmem:[%s138 + $0x308] sm:$0xff] %v985
        %1498 = vst [vmem:[%s138 + $0x318] sm:$0xff] %v986
        %1499 = vst [vmem:[%s138 + $0x320] sm:$0xff] %v987
        %1500 = vst [vmem:[%s138 + $0x330] sm:$0xff] %v988
        %1501 = vst [vmem:[%s138 + $0x338] sm:$0xff] %v989
        %1502 = vst [vmem:[%s138 + $0x348] sm:$0xff] %v990
        %1503 = vst [vmem:[%s138 + $0x350] sm:$0xff] %v991
        %1504 = vst [vmem:[%s138 + $0x360] sm:$0xff] %v992
        %1505 = vst [vmem:[%s138 + $0x368] sm:$0xff] %v993
        %1506 = vst [vmem:[%s138 + $0x378] sm:$0xff] %v994
        %1507 = vst [vmem:[%s138 + $0x380] sm:$0xff] %v995
        %1508 = vst [vmem:[%s138 + $0x390] sm:$0xff] %v996
        %1509 = vst [vmem:[%s138 + $0x398] sm:$0xff] %v997
        %1510 = vst [vmem:[%s138 + $0x3a8] sm:$0xff] %v998
        %1511 = vst [vmem:[%s138 + $0x3b0] sm:$0xff] %v999
        %1512 = vst [vmem:[%s138 + $0x3c0] sm:$0xff] %v1000
        %1513 = vst [vmem:[%s138 + $0x3c8] sm:$0xff] %v1001
        %1514 = vst [vmem:[%s138 + $0x3d8] sm:$0xff] %v1002
        %1515 = vst [vmem:[%s138 + $0x3e0] sm:$0xff] %v1003
        %1516 = vst [vmem:[%s138 + $0x3f0] sm:$0xff] %v1004
        %1517 = vst [vmem:[%s138 + $0x3f8] sm:$0xff] %v1005
        %1518 = vst [vmem:[%s138 + $0x408] sm:$0xff] %v1006
        %1519 = vst [vmem:[%s138 + $0x410] sm:$0xff] %v1007
        %1520 = vst [vmem:[%s138 + $0x420] sm:$0xff] %v1008
        %1521 = vst [vmem:[%s138 + $0x428] sm:$0xff] %v1009
        %1522 = vst [vmem:[%s138 + $0x438] sm:$0xff] %v1010
        %1523 = vst [vmem:[%s138 + $0x440] sm:$0xff] %v1011
        %1524 = vst [vmem:[%s138 + $0x450] sm:$0xff] %v1012
        %1525 = vst [vmem:[%s138 + $0x458] sm:$0xff] %v1013
        %1526 = vst [vmem:[%s138 + $0x468] sm:$0xff] %v1014
        %1527 = vst [vmem:[%s138 + $0x470] sm:$0xff] %v1015
        %1528 = vst [vmem:[%s138 + $0x480] sm:$0xff] %v1016
        %1529 = vst [vmem:[%s138 + $0x488] sm:$0xff] %v1017
        %1530 = vst [vmem:[%s138 + $0x498] sm:$0xff] %v1018
        %1531 = vst [vmem:[%s138 + $0x4a0] sm:$0xff] %v1019
        %1532 = vst [vmem:[%s138 + $0x4b0] sm:$0xff] %v1020
        %1533 = vst [vmem:[%s138 + $0x4b8] sm:$0xff] %v1021
        %1534 = vst [vmem:[%s138 + $0x4c8] sm:$0xff] %v1022
        %1535 = vst [vmem:[%s138 + $0x4d0] sm:$0xff] %v1023
        %1536 = vst [vmem:[%s138 + $0x4e0] sm:$0xff] %v1024
        %1537 = vst [vmem:[%s138 + $0x4e8] sm:$0xff] %v1025
        %1538 = vst [vmem:[%s138 + $0x4f8] sm:$0xff] %v1026
        %1539 = vst [vmem:[%s138 + $0x500] sm:$0xff] %v1027
        %1540 = vst [vmem:[%s138 + $0x510] sm:$0xff] %v1028
        %1541 = vst [vmem:[%s138 + $0x518] sm:$0xff] %v1029
        %1542 = vst [vmem:[%s138 + $0x528] sm:$0xff] %v1030
        %1543 = vst [vmem:[%s138 + $0x530] sm:$0xff] %v1031
        %1544 = vst [vmem:[%s138 + $0x540] sm:$0xff] %v1032
        %1545 = vst [vmem:[%s138 + $0x548] sm:$0xff] %v1033
        %1546 = vst [vmem:[%s138 + $0x558] sm:$0xff] %v1034
        %1547 = vst [vmem:[%s138 + $0x560] sm:$0xff] %v1035
        %1548 = vst [vmem:[%s138 + $0x570] sm:$0xff] %v1036
        %1549 = vst [vmem:[%s138 + $0x578] sm:$0xff] %v1037
        %1550 = vst [vmem:[%s138 + $0x588] sm:$0xff] %v1038
        %1551 = vst [vmem:[%s138 + $0x590] sm:$0xff] %v1039
        %1552 = vst [vmem:[%s138 + $0x5a0] sm:$0xff] %v1040
        %1553 = vst [vmem:[%s138 + $0x5a8] sm:$0xff] %v1041
        %1554 = vst [vmem:[%s138 + $0x5b8] sm:$0xff] %v1042
        %1555 = vst [vmem:[%s138 + $0x5c0] sm:$0xff] %v1043
        %1556 = vst [vmem:[%s138 + $0x5d0] sm:$0xff] %v1044
        %1557 = vst [vmem:[%s138 + $0x5d8] sm:$0xff] %v1045
        %1558 = vst [vmem:[%s138 + $0x5e8] sm:$0xff] %v1046
        %1559 = vst [vmem:[%s138 + $0x5f0] sm:$0xff] %v1047
        %1560 = vst [vmem:[%s138 + $0x600] sm:$0xff] %v1048
        %1561 = vst [vmem:[%s138 + $0x608] sm:$0xff] %v1049
        %1562 = vst [vmem:[%s138 + $0x618] sm:$0xff] %v1050
        %1563 = vst [vmem:[%s138 + $0x620] sm:$0xff] %v1051
        %1564 = vst [vmem:[%s138 + $0x630] sm:$0xff] %v1052
        %1565 = vst [vmem:[%s138 + $0x638] sm:$0xff] %v1053
        %1566 = vst [vmem:[%s138 + $0x648] sm:$0xff] %v1054
        %1567 = vst [vmem:[%s138 + $0x650] sm:$0xff] %v1055
        %1568 = vst [vmem:[%s138 + $0x660] sm:$0xff] %v1056
        %1569 = vst [vmem:[%s138 + $0x668] sm:$0xff] %v1057
        %1570 = vst [vmem:[%s138 + $0x678] sm:$0xff] %v1058
        %1571 = vst [vmem:[%s138 + $0x680] sm:$0xff] %v1059
        %1572 = vst [vmem:[%s138 + $0x690] sm:$0xff] %v1060
        %1573 = vst [vmem:[%s138 + $0x698] sm:$0xff] %v1061
        %1574 = vst [vmem:[%s138 + $0x6a8] sm:$0xff] %v1062
        %1575 = vst [vmem:[%s138 + $0x6b0] sm:$0xff] %v1063
        %1576 = vst [vmem:[%s138 + $0x6c0] sm:$0xff] %v1064
        %1577 = vst [vmem:[%s138 + $0x6c8] sm:$0xff] %v1065
        %1578 = vst [vmem:[%s138 + $0x6d8] sm:$0xff] %v1066
        %1579 = vst [vmem:[%s138 + $0x6e0] sm:$0xff] %v1067
        %1580 = vst [vmem:[%s138 + $0x6f0] sm:$0xff] %v1068
        %1581 = vst [vmem:[%s138 + $0x6f8] sm:$0xff] %v1069
        %1582 = vst [vmem:[%s138 + $0x708] sm:$0xff] %v1070
        %1583 = vst [vmem:[%s138 + $0x710] sm:$0xff] %v1071
        %1584 = vst [vmem:[%s138 + $0x720] sm:$0xff] %v1072
        %1585 = vst [vmem:[%s138 + $0x728] sm:$0xff] %v1073
        %1586 = vst [vmem:[%s138 + $0x738] sm:$0xff] %v1074
        %1587 = vst [vmem:[%s138 + $0x740] sm:$0xff] %v1075
        %1588 = vst [vmem:[%s138 + $0x750] sm:$0xff] %v1076
        %1589 = vst [vmem:[%s138 + $0x758] sm:$0xff] %v1077
        %1590 = vst [vmem:[%s138 + $0x768] sm:$0xff] %v1078
        %1591 = vst [vmem:[%s138 + $0x770] sm:$0xff] %v1079
        %1592 = vst [vmem:[%s138 + $0x780] sm:$0xff] %v1080
        %1593 = vst [vmem:[%s138 + $0x788] sm:$0xff] %v1081
        %1594 = vst [vmem:[%s138 + $0x798] sm:$0xff] %v1082
        %1595 = vst [vmem:[%s138 + $0x7a0] sm:$0xff] %v1083
        %1596 = vst [vmem:[%s138 + $0x7b0] sm:$0xff] %v1084
        %1597 = vst [vmem:[%s138 + $0x7b8] sm:$0xff] %v1085
        %1598 = vst [vmem:[%s138 + $0x7c8] sm:$0xff] %v1086
        %1599 = vst [vmem:[%s138 + $0x7d0] sm:$0xff] %v1087
        %1600 = vst [vmem:[%s138 + $0x7e0] sm:$0xff] %v1088
        %1601 = vst [vmem:[%s138 + $0x7e8] sm:$0xff] %v1089
        %1602 = vst [vmem:[%s138 + $0x7f8] sm:$0xff] %v1090
        %1603 = vst [vmem:[%s138 + $0x800] sm:$0xff] %v1091
        %1604 = vst [vmem:[%s138 + $0x810] sm:$0xff] %v1092
        %1605 = vst [vmem:[%s138 + $0x818] sm:$0xff] %v1093
        %1606 = vst [vmem:[%s138 + $0x828] sm:$0xff] %v1094
        %1607 = vst [vmem:[%s138 + $0x830] sm:$0xff] %v1095
        %1608 = vst [vmem:[%s138 + $0x840] sm:$0xff] %v1096
        %1609 = vst [vmem:[%s138 + $0x848] sm:$0xff] %v1097
        %1610 = vst [vmem:[%s138 + $0x858] sm:$0xff] %v1098
        %1611 = vst [vmem:[%s138 + $0x860] sm:$0xff] %v1099
        %1612 = vst [vmem:[%s138 + $0x870] sm:$0xff] %v1100
        %1613 = vst [vmem:[%s138 + $0x878] sm:$0xff] %v1101
        %1614 = vst [vmem:[%s138 + $0x888] sm:$0xff] %v1102
        %1615 = vst [vmem:[%s138 + $0x890] sm:$0xff] %v1103
        %1616 = vst [vmem:[%s138 + $0x8a0] sm:$0xff] %v1104
        %1617 = vst [vmem:[%s138 + $0x8a8] sm:$0xff] %v1105
        %1618 = vst [vmem:[%s138 + $0x8b8] sm:$0xff] %v1106
        %1619 = vst [vmem:[%s138 + $0x8c0] sm:$0xff] %v1107
        %1620 = vst [vmem:[%s138 + $0x8d0] sm:$0xff] %v1108
        %1621 = vst [vmem:[%s138 + $0x8d8] sm:$0xff] %v1109
        %1622 = vst [vmem:[%s138 + $0x8e8] sm:$0xff] %v1110
        %1623 = vst [vmem:[%s138 + $0x8f0] sm:$0xff] %v1111
        %1624 = vst [vmem:[%s138 + $0x900] sm:$0xff] %v1112
        %1625 = vst [vmem:[%s138 + $0x908] sm:$0xff] %v1113
        %1626 = vst [vmem:[%s138 + $0x918] sm:$0xff] %v1114
        %1627 = vst [vmem:[%s138 + $0x920] sm:$0xff] %v1115
        %1628 = vst [vmem:[%s138 + $0x930] sm:$0xff] %v1116
        %1629 = vst [vmem:[%s138 + $0x938] sm:$0xff] %v1117
        %1630 = vst [vmem:[%s138 + $0x948] sm:$0xff] %v1118
        %1631 = vst [vmem:[%s138 + $0x950] sm:$0xff] %v1119
        %1632 = vst [vmem:[%s138 + $0x960] sm:$0xff] %v1120
        %1633 = vst [vmem:[%s138 + $0x968] sm:$0xff] %v1121
        %1634 = vst [vmem:[%s138 + $0x978] sm:$0xff] %v1122
        %1635 = vst [vmem:[%s138 + $0x980] sm:$0xff] %v1123
        %1636 = vst [vmem:[%s138 + $0x990] sm:$0xff] %v1124
        %1637 = vst [vmem:[%s138 + $0x998] sm:$0xff] %v1125
        %1638 = vst [vmem:[%s138 + $0x9a8] sm:$0xff] %v1126
        %1639 = vst [vmem:[%s138 + $0x9b0] sm:$0xff] %v1127
        %1640 = vst [vmem:[%s138 + $0x9c0] sm:$0xff] %v1128
        %1641 = vst [vmem:[%s138 + $0x9c8] sm:$0xff] %v1129
        %1642 = vst [vmem:[%s138 + $0x9d8] sm:$0xff] %v1130
        %1643 = vst [vmem:[%s138 + $0x9e0] sm:$0xff] %v1131
        %1644 = vst [vmem:[%s138 + $0x9f0] sm:$0xff] %v1132
        %1645 = vst [vmem:[%s138 + $0x9f8] sm:$0xff] %v1133
        %1646 = vst [vmem:[%s138 + $0xa08] sm:$0xff] %v1134
        %1647 = vst [vmem:[%s138 + $0xa10] sm:$0xff] %v1135
        %1648 = vst [vmem:[%s138 + $0xa20] sm:$0xff] %v1136
        %1649 = vst [vmem:[%s138 + $0xa28] sm:$0xff] %v1137
        %1650 = vst [vmem:[%s138 + $0xa38] sm:$0xff] %v1138
        %1651 = vst [vmem:[%s138 + $0xa40] sm:$0xff] %v1139
        %1652 = vst [vmem:[%s138 + $0xa50] sm:$0xff] %v1140
        %1653 = vst [vmem:[%s138 + $0xa58] sm:$0xff] %v1141
        %1654 = vst [vmem:[%s138 + $0xa68] sm:$0xff] %v1142
        %1655 = vst [vmem:[%s138 + $0xa70] sm:$0xff] %v1143
        %1656 = vst [vmem:[%s138 + $0xa80] sm:$0xff] %v1144
        %1657 = vst [vmem:[%s138 + $0xa88] sm:$0xff] %v1145
        %1658 = vst [vmem:[%s138 + $0xa98] sm:$0xff] %v1146
        %1659 = vst [vmem:[%s138 + $0xaa0] sm:$0xff] %v1147
        %1660 = vst [vmem:[%s138 + $0xab0] sm:$0xff] %v1148
        %1661 = vst [vmem:[%s138 + $0xab8] sm:$0xff] %v1149
        %1662 = vst [vmem:[%s138 + $0xac8] sm:$0xff] %v1150
        %1663 = vst [vmem:[%s138 + $0xad0] sm:$0xff] %v1151
        %1664 = vst [vmem:[%s138 + $0xae0] sm:$0xff] %v1152
        %1665 = vst [vmem:[%s138 + $0xae8] sm:$0xff] %v1153
        %1666 = vst [vmem:[%s138 + $0xaf8] sm:$0xff] %v1154
        %1667 = vst [vmem:[%s138 + $0xb00] sm:$0xff] %v1155
        %1668 = vst [vmem:[%s138 + $0xb10] sm:$0xff] %v1156
        %1669 = vst [vmem:[%s138 + $0xb18] sm:$0xff] %v1157
        %1670 = vst [vmem:[%s138 + $0xb28] sm:$0xff] %v1158
        %1671 = vst [vmem:[%s138 + $0xb30] sm:$0xff] %v1159
        %1672 = vst [vmem:[%s138 + $0xb40] sm:$0xff] %v1160
        %1673 = vst [vmem:[%s138 + $0xb48] sm:$0xff] %v1161
        %1674 = vst [vmem:[%s138 + $0xb58] sm:$0xff] %v1162
        %1675 = vst [vmem:[%s138 + $0xb60] sm:$0xff] %v1163
        %1676 = vst [vmem:[%s138 + $0xb70] sm:$0xff] %v1164
        %1677 = vst [vmem:[%s138 + $0xb78] sm:$0xff] %v1165
        %1678 = vst [vmem:[%s138 + $0xb88] sm:$0xff] %v1166
        %1679 = vst [vmem:[%s138 + $0xb90] sm:$0xff] %v1167
        %1680 = vst [vmem:[%s138 + $0xba0] sm:$0xff] %v1168
        %1681 = vst [vmem:[%s138 + $0xba8] sm:$0xff] %v1169
        %1682 = vst [vmem:[%s138 + $0xbb8] sm:$0xff] %v1170
        %1683 = vst [vmem:[%s138 + $0xbc0] sm:$0xff] %v1171
        %1684 = vst [vmem:[%s138 + $0xbd0] sm:$0xff] %v1172
        %1685 = vst [vmem:[%s138 + $0xbd8] sm:$0xff] %v1173
        %1686 = vst [vmem:[%s138 + $0xbe8] sm:$0xff] %v1174
        %1687 = vst [vmem:[%s138 + $0xbf0] sm:$0xff] %v1175
        %1688 = vst [vmem:[%s138 + $0xc00] sm:$0xff] %v1176
        %1689 = vst [vmem:[%s138 + $0xc08] sm:$0xff] %v1177
        %1690 = vst [vmem:[%s138 + $0xc18] sm:$0xff] %v1178
        %1691 = vst [vmem:[%s138 + $0xc20] sm:$0xff] %v1179
        %1692 = vst [vmem:[%s138 + $0xc30] sm:$0xff] %v1180
        %1693 = vst [vmem:[%s138 + $0xc38] sm:$0xff] %v1181
        %1694 = vst [vmem:[%s138 + $0xc48] sm:$0xff] %v1182
        %1695 = vst [vmem:[%s138 + $0xc50] sm:$0xff] %v1183
        %1696 = vst [vmem:[%s138 + $0xc60] sm:$0xff] %v1184
        %1697 = vst [vmem:[%s138 + $0xc68] sm:$0xff] %v1185
        %1698 = vst [vmem:[%s138 + $0xc78] sm:$0xff] %v1186
        %1699 = vst [vmem:[%s138 + $0xc80] sm:$0xff] %v1187
        %1700 = vst [vmem:[%s138 + $0xc90] sm:$0xff] %v1188
        %1701 = vst [vmem:[%s138 + $0xc98] sm:$0xff] %v1189
        %1702 = vst [vmem:[%s138 + $0xca8] sm:$0xff] %v1190
        %1703 = vst [vmem:[%s138 + $0xcb0] sm:$0xff] %v1191
        %1704 = vst [vmem:[%s138 + $0xcc0] sm:$0xff] %v1192
        %1705 = vst [vmem:[%s138 + $0xcc8] sm:$0xff] %v1193
        %1706 = vst [vmem:[%s138 + $0xcd8] sm:$0xff] %v1194
        %1707 = vst [vmem:[%s138 + $0xce0] sm:$0xff] %v1195
        %1708 = vst [vmem:[%s138 + $0xcf0] sm:$0xff] %v1196
        %1709 = vst [vmem:[%s138 + $0xcf8] sm:$0xff] %v1197
        %1710 = vst [vmem:[%s138 + $0xd08] sm:$0xff] %v1198
        %1711 = vst [vmem:[%s138 + $0xd10] sm:$0xff] %v1199
        %1712 = vst [vmem:[%s138 + $0xd20] sm:$0xff] %v1200
        %1713 = vst [vmem:[%s138 + $0xd28] sm:$0xff] %v1201
        %1714 = vst [vmem:[%s138 + $0xd38] sm:$0xff] %v1202
        %1715 = vst [vmem:[%s138 + $0xd40] sm:$0xff] %v1203
        %1716 = vst [vmem:[%s138 + $0xd50] sm:$0xff] %v1204
        %1717 = vst [vmem:[%s138 + $0xd58] sm:$0xff] %v1205
        %1718 = vst [vmem:[%s138 + $0xd68] sm:$0xff] %v1206
        %1719 = vst [vmem:[%s138 + $0xd70] sm:$0xff] %v1207
        %1720 = vst [vmem:[%s138 + $0xd80] sm:$0xff] %v1208
        %1721 = vst [vmem:[%s138 + $0xd88] sm:$0xff] %v1209
        %1722 = vst [vmem:[%s138 + $0xd98] sm:$0xff] %v1210
        %1723 = vst [vmem:[%s138 + $0xda0] sm:$0xff] %v1211
        %1724 = vst [vmem:[%s138 + $0xdb0] sm:$0xff] %v1212
        %1725 = vst [vmem:[%s138 + $0xdb8] sm:$0xff] %v1213
        %1726 = vst [vmem:[%s138 + $0xdc8] sm:$0xff] %v1214
        %1727 = vst [vmem:[%s138 + $0xdd0] sm:$0xff] %v1215
        %1728 = vst [vmem:[%s138 + $0xde0] sm:$0xff] %v1216
        %1729 = vst [vmem:[%s138 + $0xde8] sm:$0xff] %v1217
        %1730 = vst [vmem:[%s138 + $0xdf8] sm:$0xff] %v1218
        %1731 = vst [vmem:[%s138 + $0xe00] sm:$0xff] %v1219
        %1732 = vst [vmem:[%s138 + $0xe10] sm:$0xff] %v1220
        %1733 = vst [vmem:[%s138 + $0xe18] sm:$0xff] %v1221
        %1734 = vst [vmem:[%s138 + $0xe28] sm:$0xff] %v1222
        %1735 = vst [vmem:[%s138 + $0xe30] sm:$0xff] %v1223
        %1736 = vst [vmem:[%s138 + $0xe40] sm:$0xff] %v1224
        %1737 = vst [vmem:[%s138 + $0xe48] sm:$0xff] %v1225
        %1738 = vst [vmem:[%s138 + $0xe58] sm:$0xff] %v1226
        %1739 = vst [vmem:[%s138 + $0xe60] sm:$0xff] %v1227
        %1740 = vst [vmem:[%s138 + $0xe70] sm:$0xff] %v1228
        %1741 = vst [vmem:[%s138 + $0xe78] sm:$0xff] %v1229
        %1742 = vst [vmem:[%s138 + $0xe88] sm:$0xff] %v1230
        %1743 = vst [vmem:[%s138 + $0xe90] sm:$0xff] %v1231
        %1744 = vst [vmem:[%s138 + $0xea0] sm:$0xff] %v1232
        %1745 = vst [vmem:[%s138 + $0xea8] sm:$0xff] %v1233
        %1746 = vst [vmem:[%s138 + $0xeb8] sm:$0xff] %v1234
        %1747 = vst [vmem:[%s138 + $0xec0] sm:$0xff] %v1235
        %1748 = vst [vmem:[%s138 + $0xed0] sm:$0xff] %v1236
        %1749 = vst [vmem:[%s138 + $0xed8] sm:$0xff] %v1237
        %1750 = vst [vmem:[%s138 + $0xee8] sm:$0xff] %v1238
        %1751 = vst [vmem:[%s138 + $0xef0] sm:$0xff] %v1239
        %1752 = vst [vmem:[%s138 + $0xf00] sm:$0xff] %v1240
        %1753 = vst [vmem:[%s138 + $0xf08] sm:$0xff] %v1241
        %1754 = vst [vmem:[%s138 + $0xf18] sm:$0xff] %v1242
        %1755 = vst [vmem:[%s138 + $0xf20] sm:$0xff] %v1243
        %1756 = vst [vmem:[%s138 + $0xf30] sm:$0xff] %v1244
        %1757 = vst [vmem:[%s138 + $0xf38] sm:$0xff] %v1245
        %1758 = vst [vmem:[%s138 + $0xf48] sm:$0xff] %v1246
        %1759 = vst [vmem:[%s138 + $0xf50] sm:$0xff] %v1247
        %1760 = vst [vmem:[%s138 + $0xf60] sm:$0xff] %v1248
        %1761 = vst [vmem:[%s138 + $0xf68] sm:$0xff] %v1249
        %1762 = vst [vmem:[%s138 + $0xf78] sm:$0xff] %v1250
        %1763 = vst [vmem:[%s138 + $0xf80] sm:$0xff] %v1251
        %1764 = vst [vmem:[%s138 + $0xf90] sm:$0xff] %v1252
        %1765 = vst [vmem:[%s138 + $0xf98] sm:$0xff] %v1253
        %1766 = vst [vmem:[%s138 + $0xfa8] sm:$0xff] %v1254
        %1767 = vst [vmem:[%s138 + $0xfb0] sm:$0xff] %v1255
        %1768 = vst [vmem:[%s138 + $0xfc0] sm:$0xff] %v1256
        %1769 = vst [vmem:[%s138 + $0xfc8] sm:$0xff] %v1257
        %1770 = vst [vmem:[%s138 + $0xfd8] sm:$0xff] %v1258
        %1771 = vst [vmem:[%s138 + $0xfe0] sm:$0xff] %v1259
        %1772 = vst [vmem:[%s138 + $0xff0] sm:$0xff] %v1260
        %1773 = vst [vmem:[%s138 + $0xff8] sm:$0xff] %v1261
        %1774 = vst [vmem:[%s138 + $0x1008] sm:$0xff] %v1262
        %1775 = vst [vmem:[%s138 + $0x1010] sm:$0xff] %v1263
        %1776 = vst [vmem:[%s138 + $0x1020] sm:$0xff] %v1264
        %1777 = vst [vmem:[%s138 + $0x1028] sm:$0xff] %v1265
        %1778 = vst [vmem:[%s138 + $0x1038] sm:$0xff] %v1266
        %1779 = vst [vmem:[%s138 + $0x1040] sm:$0xff] %v1267
        %1780 = vst [vmem:[%s138 + $0x1050] sm:$0xff] %v1268
        %1781 = vst [vmem:[%s138 + $0x1058] sm:$0xff] %v1269
        %1782 = vst [vmem:[%s138 + $0x1068] sm:$0xff] %v1270
        %1783 = vst [vmem:[%s138 + $0x1070] sm:$0xff] %v1271
        %1784 = vst [vmem:[%s138 + $0x1080] sm:$0xff] %v1272
        %1785 = vst [vmem:[%s138 + $0x1088] sm:$0xff] %v1273
        %1786 = vst [vmem:[%s138 + $0x1098] sm:$0xff] %v1274
        %1787 = vst [vmem:[%s138 + $0x10a0] sm:$0xff] %v1275
        %1788 = vst [vmem:[%s138 + $0x10b0] sm:$0xff] %v1276
        %1789 = vst [vmem:[%s138 + $0x10b8] sm:$0xff] %v1277
        %1790 = vst [vmem:[%s138 + $0x10c8] sm:$0xff] %v1278
        %1791 = vst [vmem:[%s138 + $0x10d0] sm:$0xff] %v1279
        %1792 = vst [vmem:[%s138 + $0x10e0] sm:$0xff] %v1280
        %1793 = vst [vmem:[%s138 + $0x10e8] sm:$0xff] %v1281
        %1794 = vst [vmem:[%s138 + $0x10f8] sm:$0xff] %v1282
        %1795 = vst [vmem:[%s138 + $0x1100] sm:$0xff] %v1283
        %1796 = vst [vmem:[%s138 + $0x1110] sm:$0xff] %v1284
        %1797 = vst [vmem:[%s138 + $0x1118] sm:$0xff] %v1285
        %1798 = vst [vmem:[%s138 + $0x1128] sm:$0xff] %v1286
        %1799 = vst [vmem:[%s138 + $0x1130] sm:$0xff] %v1287
        %1800 = vst [vmem:[%s138 + $0x1140] sm:$0xff] %v1288
        %1801 = vst [vmem:[%s138 + $0x1148] sm:$0xff] %v1289
        %1802 = vst [vmem:[%s138 + $0x1158] sm:$0xff] %v1290
        %1803 = vst [vmem:[%s138 + $0x1160] sm:$0xff] %v1291
        %1804 = vst [vmem:[%s138 + $0x1170] sm:$0xff] %v1292
        %1805 = vst [vmem:[%s138 + $0x1178] sm:$0xff] %v1293
        %1806 = vst [vmem:[%s138 + $0x1188] sm:$0xff] %v1294
        %1807 = vst [vmem:[%s138 + $0x1190] sm:$0xff] %v1295
        %1808 = vst [vmem:[%s138 + $0x11a0] sm:$0xff] %v1296
        %1809 = vst [vmem:[%s138 + $0x11a8] sm:$0xff] %v1297
        %1810 = vst [vmem:[%s138 + $0x11b8] sm:$0xff] %v1298
        %1811 = vst [vmem:[%s138 + $0x11c0] sm:$0xff] %v1299
        %1812 = vst [vmem:[%s138 + $0x11d0] sm:$0xff] %v1300
        %1813 = vst [vmem:[%s138 + $0x11d8] sm:$0xff] %v1301
        %1814 = vst [vmem:[%s138 + $0x11e8] sm:$0xff] %v1302
        %1815 = vst [vmem:[%s138 + $0x11f0] sm:$0xff] %v1303
        %1816 = vst [vmem:[%s138 + $0x1200] sm:$0xff] %v1304
        %1817 = vst [vmem:[%s138 + $0x1208] sm:$0xff] %v1305
        %1818 = vst [vmem:[%s138 + $0x1218] sm:$0xff] %v1306
        %1819 = vst [vmem:[%s138 + $0x1220] sm:$0xff] %v1307
        %1820 = vst [vmem:[%s138 + $0x1230] sm:$0xff] %v1308
        %1821 = vst [vmem:[%s138 + $0x1238] sm:$0xff] %v1309
        %1822 = vst [vmem:[%s138 + $0x1248] sm:$0xff] %v1310
        %1823 = vst [vmem:[%s138 + $0x1250] sm:$0xff] %v1311
        %1824 = vst [vmem:[%s138 + $0x1260] sm:$0xff] %v1312
        %1825 = vst [vmem:[%s138 + $0x1268] sm:$0xff] %v1313
        %1826 = vst [vmem:[%s138 + $0x1278] sm:$0xff] %v1314
        %1827 = vst [vmem:[%s138 + $0x1280] sm:$0xff] %v1315
        %1828 = vst [vmem:[%s138 + $0x1290] sm:$0xff] %v1316
        %1829 = vst [vmem:[%s138 + $0x1298] sm:$0xff] %v1317
        %1830 = vst [vmem:[%s138 + $0x12a8] sm:$0xff] %v1318
        %1831 = vst [vmem:[%s138 + $0x12b0] sm:$0xff] %v1319
        %1832 = vst [vmem:[%s138 + $0x12c0] sm:$0xff] %v1320
        %1833 = vst [vmem:[%s138 + $0x12c8] sm:$0xff] %v1321
        %1834 = vst [vmem:[%s138 + $0x12d8] sm:$0xff] %v1322
        %1835 = vst [vmem:[%s138 + $0x12e0] sm:$0xff] %v1323
        %1836 = vst [vmem:[%s138 + $0x12f0] sm:$0xff] %v1324
        %1837 = vst [vmem:[%s138 + $0x12f8] sm:$0xff] %v1325
        %1838 = vst [vmem:[%s138 + $0x1308] sm:$0xff] %v1326
        %1839 = vst [vmem:[%s138 + $0x1310] sm:$0xff] %v1327
        %1840 = vst [vmem:[%s138 + $0x1320] sm:$0xff] %v1328
        %1841 = vst [vmem:[%s138 + $0x1328] sm:$0xff] %v1329
        %1842 = vst [vmem:[%s138 + $0x1338] sm:$0xff] %v1330
        %1843 = vst [vmem:[%s138 + $0x1340] sm:$0xff] %v1331
        %1844 = vst [vmem:[%s138 + $0x1350] sm:$0xff] %v1332
        %1845 = vst [vmem:[%s138 + $0x1358] sm:$0xff] %v1333
        %1846 = vst [vmem:[%s138 + $0x1368] sm:$0xff] %v1334
        %1847 = vst [vmem:[%s138 + $0x1370] sm:$0xff] %v1335
        %1848 = vst [vmem:[%s138 + $0x1380] sm:$0xff] %v1336
        %1849 = vst [vmem:[%s138 + $0x1388] sm:$0xff] %v1337
        %1850 = vst [vmem:[%s138 + $0x1398] sm:$0xff] %v1338
        %1851 = vst [vmem:[%s138 + $0x13a0] sm:$0xff] %v1339
        %1852 = vst [vmem:[%s138 + $0x13b0] sm:$0xff] %v1340
        %1853 = vst [vmem:[%s138 + $0x13b8] sm:$0xff] %v1341
        %1854 = vst [vmem:[%s138 + $0x13c8] sm:$0xff] %v1342
        %1855 = vst [vmem:[%s138 + $0x13d0] sm:$0xff] %v1343
        %1856 = vst [vmem:[%s138 + $0x13e0] sm:$0xff] %v1344
        %1857 = vst [vmem:[%s138 + $0x13e8] sm:$0xff] %v1345
        %1858 = vst [vmem:[%s138 + $0x13f8] sm:$0xff] %v1346
        %1859 = vst [vmem:[%s138 + $0x1400] sm:$0xff] %v1347
        %1860 = vst [vmem:[%s138 + $0x1410] sm:$0xff] %v1348
        %1861 = vst [vmem:[%s138 + $0x1418] sm:$0xff] %v1349
        %1862 = vst [vmem:[%s138 + $0x1428] sm:$0xff] %v1350
        %1863 = vst [vmem:[%s138 + $0x1430] sm:$0xff] %v1351
        %1864 = vst [vmem:[%s138 + $0x1440] sm:$0xff] %v1352
        %1865 = vst [vmem:[%s138 + $0x1448] sm:$0xff] %v1353
        %1866 = vst [vmem:[%s138 + $0x1458] sm:$0xff] %v1354
        %1867 = vst [vmem:[%s138 + $0x1460] sm:$0xff] %v1355
        %1868 = vst [vmem:[%s138 + $0x1470] sm:$0xff] %v1356
        %1869 = vst [vmem:[%s138 + $0x1478] sm:$0xff] %v1357
        %1870 = vst [vmem:[%s138 + $0x1488] sm:$0xff] %v1358
        %1871 = vst [vmem:[%s138 + $0x1490] sm:$0xff] %v1359
        %1872 = vst [vmem:[%s138 + $0x14a0] sm:$0xff] %v1360
        %1873 = vst [vmem:[%s138 + $0x14a8] sm:$0xff] %v1361
        %1874 = vst [vmem:[%s138 + $0x14b8] sm:$0xff] %v1362
        %1875 = vst [vmem:[%s138 + $0x14c0] sm:$0xff] %v1363
        %1876 = vst [vmem:[%s138 + $0x14d0] sm:$0xff] %v1364
        %1877 = vst [vmem:[%s138 + $0x14d8] sm:$0xff] %v1365
        %1878 = vst [vmem:[%s138 + $0x14e8] sm:$0xff] %v1366
        %1879 = vst [vmem:[%s138 + $0x14f0] sm:$0xff] %v1367
        %1880 = vst [vmem:[%s138 + $0x1500] sm:$0xff] %v1368
        %1881 = vst [vmem:[%s138 + $0x1508] sm:$0xff] %v1369
        %1882 = vst [vmem:[%s138 + $0x1518] sm:$0xff] %v1370
        %1883 = vst [vmem:[%s138 + $0x1520] sm:$0xff] %v1371
        %1884 = vst [vmem:[%s138 + $0x1530] sm:$0xff] %v1372
        %1885 = vst [vmem:[%s138 + $0x1538] sm:$0xff] %v1373
        %1886 = vst [vmem:[%s138 + $0x1548] sm:$0xff] %v1374
        %1887 = vst [vmem:[%s138 + $0x1550] sm:$0xff] %v1375
        %1888 = vst [vmem:[%s138 + $0x1560] sm:$0xff] %v1376
        %1889 = vst [vmem:[%s138 + $0x1568] sm:$0xff] %v1377
        %1890 = vst [vmem:[%s138 + $0x1578] sm:$0xff] %v1378
        %1891 = vst [vmem:[%s138 + $0x1580] sm:$0xff] %v1379
        %1892 = vst [vmem:[%s138 + $0x1590] sm:$0xff] %v1380
        %1893 = vst [vmem:[%s138 + $0x1598] sm:$0xff] %v1381
        %1894 = vst [vmem:[%s138 + $0x15a8] sm:$0xff] %v1382
        %1895 = vst [vmem:[%s138 + $0x15b0] sm:$0xff] %v1383
        %1896 = vst [vmem:[%s138 + $0x15c0] sm:$0xff] %v1384
        %1897 = vst [vmem:[%s138 + $0x15c8] sm:$0xff] %v1385
        %1898 = vst [vmem:[%s138 + $0x15d8] sm:$0xff] %v1386
        %1899 = vst [vmem:[%s138 + $0x15e0] sm:$0xff] %v1387
        %1900 = vst [vmem:[%s138 + $0x15f0] sm:$0xff] %v1388
        %1901 = vst [vmem:[%s138 + $0x15f8] sm:$0xff] %v1389
        %1902 = vst [vmem:[%s138 + $0x1608] sm:$0xff] %v1390
        %1903 = vst [vmem:[%s138 + $0x1610] sm:$0xff] %v1391
        %1904 = vst [vmem:[%s138 + $0x1620] sm:$0xff] %v1392
        %1905 = vst [vmem:[%s138 + $0x1628] sm:$0xff] %v1393
        %1906 = vst [vmem:[%s138 + $0x1638] sm:$0xff] %v1394
        %1907 = vst [vmem:[%s138 + $0x1640] sm:$0xff] %v1395
        %1908 = vst [vmem:[%s138 + $0x1650] sm:$0xff] %v1396
        %1909 = vst [vmem:[%s138 + $0x1658] sm:$0xff] %v1397
        %1910 = vst [vmem:[%s138 + $0x1668] sm:$0xff] %v1398
        %1911 = vst [vmem:[%s138 + $0x1670] sm:$0xff] %v1399
        %1912 = vst [vmem:[%s138 + $0x1680] sm:$0xff] %v1400
        %1913 = vst [vmem:[%s138 + $0x1688] sm:$0xff] %v1401
        %1914 = vst [vmem:[%s138 + $0x1698] sm:$0xff] %v1402
        %1915 = vst [vmem:[%s138 + $0x16a0] sm:$0xff] %v1403
        %1916 = vst [vmem:[%s138 + $0x16b0] sm:$0xff] %v1404
        %1917 = vst [vmem:[%s138 + $0x16b8] sm:$0xff] %v1405
        %1918 = vst [vmem:[%s138 + $0x16c8] sm:$0xff] %v1406
        %1919 = vst [vmem:[%s138 + $0x16d0] sm:$0xff] %v1407
        %1920 = vst [vmem:[%s138 + $0x16e0] sm:$0xff] %v1408
        %1921 = vst [vmem:[%s138 + $0x16e8] sm:$0xff] %v1409
        %1922 = vst [vmem:[%s138 + $0x16f8] sm:$0xff] %v1410
        %1923 = vst [vmem:[%s138 + $0x1700] sm:$0xff] %v1411
        %1924 = vst [vmem:[%s138 + $0x1710] sm:$0xff] %v1412
        %1925 = vst [vmem:[%s138 + $0x1718] sm:$0xff] %v1413
        %1926 = vst [vmem:[%s138 + $0x1728] sm:$0xff] %v1414
        %1927 = vst [vmem:[%s138 + $0x1730] sm:$0xff] %v1415
        %1928 = vst [vmem:[%s138 + $0x1740] sm:$0xff] %v1416
        %1929 = vst [vmem:[%s138 + $0x1748] sm:$0xff] %v1417
        %1930 = vst [vmem:[%s138 + $0x1758] sm:$0xff] %v1418
        %1931 = vst [vmem:[%s138 + $0x1760] sm:$0xff] %v1419
        %1932 = vst [vmem:[%s138 + $0x1770] sm:$0xff] %v1420
        %1933 = vst [vmem:[%s138 + $0x1778] sm:$0xff] %v1421
        %1934 = vst [vmem:[%s138 + $0x1788] sm:$0xff] %v1422
        %1935 = vst [vmem:[%s138 + $0x1790] sm:$0xff] %v1423
        %1936 = vst [vmem:[%s138 + $0x17a0] sm:$0xff] %v1424
        %1937 = vst [vmem:[%s138 + $0x17a8] sm:$0xff] %v1425
        %1938 = vst [vmem:[%s138 + $0x17b8] sm:$0xff] %v1426
        %1939 = vst [vmem:[%s138 + $0x17c0] sm:$0xff] %v1427
        %1940 = vst [vmem:[%s138 + $0x17d0] sm:$0xff] %v1428
        %1941 = vst [vmem:[%s138 + $0x17d8] sm:$0xff] %v1429
        %1942 = vst [vmem:[%s138 + $0x17e8] sm:$0xff] %v1430
        %1943 = vst [vmem:[%s138 + $0x17f0] sm:$0xff] %v1431
        %s1944 = sand.u32 %s49, 1
        %s1945 = sand.u32 %s49, 1
        %s1946 = smul.addr %s1945, 6144
        %s1947 = scalar_lea.vmem [#allocation4], %s1946
        // Predicated region
        $region29: #{tpu_custom_call.1} parent=23 // pred_check
          %p1948 = pneg %p59
        $region30: #{tpu_custom_call.1} parent=23 // pred_check_branch
          %1950 = sbr.rel (%p1948) target = $region32
        $region31: #{tpu_custom_call.1} parent=23 // pred_region
          %s1951 = smul.u32 256, %s15
          %s1952 = ssub.s32 625, %s1951
          %p1953 = scmp.lt.s32.totalorder %s1952, 256
          %s1954 = scalar_select %p1953, %s1952, 256
          %s1955 = smul.u32 128, %s1954
          %s1956 = smul.u32 %s1955, 3
          %p1957 = scmp.ne.s32.totalorder 0, %s1956
          %s1958 = smul.addr %s1951, 3
          %s1959 = smul.addr %s1958, 8
          %s1960 = scalar_lea.vmem %s1, %s1959
          // Predicated region
          $region33: #{tpu_custom_call.1} parent=31 // pred_check
            %p1961 = pneg %p1957
          $region34: #{tpu_custom_call.1} parent=31 // pred_check_branch
            %1963 = sbr.rel (%p1961) target = $region36
          $region35: #{tpu_custom_call.1} parent=31 // pred_region
            // Predicated region
            $region37: #{tpu_custom_call.1} parent=35 // pred_check
              _
            $region38: #{tpu_custom_call.1} parent=35 // pred_check_branch
              %1965 = sbr.rel (0) target = $region40
            $region39: #{tpu_custom_call.1} parent=35 // pred_region
              %s1966 = sdiv.u32.pop %s1954, 22
              %s1967 = srem.u32.pop %s1954, 22
              // While loop
              $region41: #{tpu_custom_call.1} parent=39 // loop_pre_header
                _
              $region42: #{tpu_custom_call.1} parent=39 // loop_header
                %s1969 = sphi 0, %s1971
                %p1970 = scmp.ge.s32.totalorder %s1969, %s1966
                %s1974 = sphi 0, %s2111
                %s1975 = sphi %s1947, %s2114
                %s1976 = sphi %s1960, %s2115
              $region43: #{tpu_custom_call.1} parent=39 // loop_header_branch
                %1973 = sbr.rel (%p1970) target = $region47
              $region44: #{tpu_custom_call.1} parent=39 // loop_body
                %v1977 = vld [vmem:[%s1975] sm:$0xff]
                %1978 = vst [vmem:[%s1976] sm:$0xff] %v1977
                %v1979 = vld [vmem:[%s1975 + $0x18] sm:$0xff]
                %1980 = vst [vmem:[%s1976 + $0x18] sm:$0xff] %v1979
                %v1981 = vld [vmem:[%s1975 + $0x30] sm:$0xff]
                %1982 = vst [vmem:[%s1976 + $0x30] sm:$0xff] %v1981
                %v1983 = vld [vmem:[%s1975 + $0x48] sm:$0xff]
                %1984 = vst [vmem:[%s1976 + $0x48] sm:$0xff] %v1983
                %v1985 = vld [vmem:[%s1975 + $0x60] sm:$0xff]
                %1986 = vst [vmem:[%s1976 + $0x60] sm:$0xff] %v1985
                %v1987 = vld [vmem:[%s1975 + $0x78] sm:$0xff]
                %1988 = vst [vmem:[%s1976 + $0x78] sm:$0xff] %v1987
                %v1989 = vld [vmem:[%s1975 + $0x90] sm:$0xff]
                %1990 = vst [vmem:[%s1976 + $0x90] sm:$0xff] %v1989
                %v1991 = vld [vmem:[%s1975 + $0xa8] sm:$0xff]
                %1992 = vst [vmem:[%s1976 + $0xa8] sm:$0xff] %v1991
                %v1993 = vld [vmem:[%s1975 + $0xc0] sm:$0xff]
                %1994 = vst [vmem:[%s1976 + $0xc0] sm:$0xff] %v1993
                %v1995 = vld [vmem:[%s1975 + $0xd8] sm:$0xff]
                %1996 = vst [vmem:[%s1976 + $0xd8] sm:$0xff] %v1995
                %v1997 = vld [vmem:[%s1975 + $0xf0] sm:$0xff]
                %1998 = vst [vmem:[%s1976 + $0xf0] sm:$0xff] %v1997
                %v1999 = vld [vmem:[%s1975 + $0x108] sm:$0xff]
                %2000 = vst [vmem:[%s1976 + $0x108] sm:$0xff] %v1999
                %v2001 = vld [vmem:[%s1975 + $0x120] sm:$0xff]
                %2002 = vst [vmem:[%s1976 + $0x120] sm:$0xff] %v2001
                %v2003 = vld [vmem:[%s1975 + $0x138] sm:$0xff]
                %2004 = vst [vmem:[%s1976 + $0x138] sm:$0xff] %v2003
                %v2005 = vld [vmem:[%s1975 + $0x150] sm:$0xff]
                %2006 = vst [vmem:[%s1976 + $0x150] sm:$0xff] %v2005
                %v2007 = vld [vmem:[%s1975 + $0x168] sm:$0xff]
                %2008 = vst [vmem:[%s1976 + $0x168] sm:$0xff] %v2007
                %v2009 = vld [vmem:[%s1975 + $0x180] sm:$0xff]
                %2010 = vst [vmem:[%s1976 + $0x180] sm:$0xff] %v2009
                %v2011 = vld [vmem:[%s1975 + $0x198] sm:$0xff]
                %2012 = vst [vmem:[%s1976 + $0x198] sm:$0xff] %v2011
                %v2013 = vld [vmem:[%s1975 + $0x1b0] sm:$0xff]
                %2014 = vst [vmem:[%s1976 + $0x1b0] sm:$0xff] %v2013
                %v2015 = vld [vmem:[%s1975 + $0x1c8] sm:$0xff]
                %2016 = vst [vmem:[%s1976 + $0x1c8] sm:$0xff] %v2015
                %v2017 = vld [vmem:[%s1975 + $0x1e0] sm:$0xff]
                %2018 = vst [vmem:[%s1976 + $0x1e0] sm:$0xff] %v2017
                %v2019 = vld [vmem:[%s1975 + $0x1f8] sm:$0xff]
                %2020 = vst [vmem:[%s1976 + $0x1f8] sm:$0xff] %v2019
                %v2021 = vld [vmem:[%s1975 + $0x8] sm:$0xff]
                %2022 = vst [vmem:[%s1976 + $0x8] sm:$0xff] %v2021
                %v2023 = vld [vmem:[%s1975 + $0x20] sm:$0xff]
                %2024 = vst [vmem:[%s1976 + $0x20] sm:$0xff] %v2023
                %v2025 = vld [vmem:[%s1975 + $0x38] sm:$0xff]
                %2026 = vst [vmem:[%s1976 + $0x38] sm:$0xff] %v2025
                %v2027 = vld [vmem:[%s1975 + $0x50] sm:$0xff]
                %2028 = vst [vmem:[%s1976 + $0x50] sm:$0xff] %v2027
                %v2029 = vld [vmem:[%s1975 + $0x68] sm:$0xff]
                %2030 = vst [vmem:[%s1976 + $0x68] sm:$0xff] %v2029
                %v2031 = vld [vmem:[%s1975 + $0x80] sm:$0xff]
                %2032 = vst [vmem:[%s1976 + $0x80] sm:$0xff] %v2031
                %v2033 = vld [vmem:[%s1975 + $0x98] sm:$0xff]
                %2034 = vst [vmem:[%s1976 + $0x98] sm:$0xff] %v2033
                %v2035 = vld [vmem:[%s1975 + $0xb0] sm:$0xff]
                %2036 = vst [vmem:[%s1976 + $0xb0] sm:$0xff] %v2035
                %v2037 = vld [vmem:[%s1975 + $0xc8] sm:$0xff]
                %2038 = vst [vmem:[%s1976 + $0xc8] sm:$0xff] %v2037
                %v2039 = vld [vmem:[%s1975 + $0xe0] sm:$0xff]
                %2040 = vst [vmem:[%s1976 + $0xe0] sm:$0xff] %v2039
                %v2041 = vld [vmem:[%s1975 + $0xf8] sm:$0xff]
                %2042 = vst [vmem:[%s1976 + $0xf8] sm:$0xff] %v2041
                %v2043 = vld [vmem:[%s1975 + $0x110] sm:$0xff]
                %2044 = vst [vmem:[%s1976 + $0x110] sm:$0xff] %v2043
                %v2045 = vld [vmem:[%s1975 + $0x128] sm:$0xff]
                %2046 = vst [vmem:[%s1976 + $0x128] sm:$0xff] %v2045
                %v2047 = vld [vmem:[%s1975 + $0x140] sm:$0xff]
                %2048 = vst [vmem:[%s1976 + $0x140] sm:$0xff] %v2047
                %v2049 = vld [vmem:[%s1975 + $0x158] sm:$0xff]
                %2050 = vst [vmem:[%s1976 + $0x158] sm:$0xff] %v2049
                %v2051 = vld [vmem:[%s1975 + $0x170] sm:$0xff]
                %2052 = vst [vmem:[%s1976 + $0x170] sm:$0xff] %v2051
                %v2053 = vld [vmem:[%s1975 + $0x188] sm:$0xff]
                %2054 = vst [vmem:[%s1976 + $0x188] sm:$0xff] %v2053
                %v2055 = vld [vmem:[%s1975 + $0x1a0] sm:$0xff]
                %2056 = vst [vmem:[%s1976 + $0x1a0] sm:$0xff] %v2055
                %v2057 = vld [vmem:[%s1975 + $0x1b8] sm:$0xff]
                %2058 = vst [vmem:[%s1976 + $0x1b8] sm:$0xff] %v2057
                %v2059 = vld [vmem:[%s1975 + $0x1d0] sm:$0xff]
                %2060 = vst [vmem:[%s1976 + $0x1d0] sm:$0xff] %v2059
                %v2061 = vld [vmem:[%s1975 + $0x1e8] sm:$0xff]
                %2062 = vst [vmem:[%s1976 + $0x1e8] sm:$0xff] %v2061
                %v2063 = vld [vmem:[%s1975 + $0x200] sm:$0xff]
                %2064 = vst [vmem:[%s1976 + $0x200] sm:$0xff] %v2063
                %v2065 = vld [vmem:[%s1975 + $0x10] sm:$0xff]
                %2066 = vst [vmem:[%s1976 + $0x10] sm:$0xff] %v2065
                %v2067 = vld [vmem:[%s1975 + $0x28] sm:$0xff]
                %2068 = vst [vmem:[%s1976 + $0x28] sm:$0xff] %v2067
                %v2069 = vld [vmem:[%s1975 + $0x40] sm:$0xff]
                %2070 = vst [vmem:[%s1976 + $0x40] sm:$0xff] %v2069
                %v2071 = vld [vmem:[%s1975 + $0x58] sm:$0xff]
                %2072 = vst [vmem:[%s1976 + $0x58] sm:$0xff] %v2071
                %v2073 = vld [vmem:[%s1975 + $0x70] sm:$0xff]
                %2074 = vst [vmem:[%s1976 + $0x70] sm:$0xff] %v2073
                %v2075 = vld [vmem:[%s1975 + $0x88] sm:$0xff]
                %2076 = vst [vmem:[%s1976 + $0x88] sm:$0xff] %v2075
                %v2077 = vld [vmem:[%s1975 + $0xa0] sm:$0xff]
                %2078 = vst [vmem:[%s1976 + $0xa0] sm:$0xff] %v2077
                %v2079 = vld [vmem:[%s1975 + $0xb8] sm:$0xff]
                %2080 = vst [vmem:[%s1976 + $0xb8] sm:$0xff] %v2079
                %v2081 = vld [vmem:[%s1975 + $0xd0] sm:$0xff]
                %2082 = vst [vmem:[%s1976 + $0xd0] sm:$0xff] %v2081
                %v2083 = vld [vmem:[%s1975 + $0xe8] sm:$0xff]
                %2084 = vst [vmem:[%s1976 + $0xe8] sm:$0xff] %v2083
                %v2085 = vld [vmem:[%s1975 + $0x100] sm:$0xff]
                %2086 = vst [vmem:[%s1976 + $0x100] sm:$0xff] %v2085
                %v2087 = vld [vmem:[%s1975 + $0x118] sm:$0xff]
                %2088 = vst [vmem:[%s1976 + $0x118] sm:$0xff] %v2087
                %v2089 = vld [vmem:[%s1975 + $0x130] sm:$0xff]
                %2090 = vst [vmem:[%s1976 + $0x130] sm:$0xff] %v2089
                %v2091 = vld [vmem:[%s1975 + $0x148] sm:$0xff]
                %2092 = vst [vmem:[%s1976 + $0x148] sm:$0xff] %v2091
                %v2093 = vld [vmem:[%s1975 + $0x160] sm:$0xff]
                %2094 = vst [vmem:[%s1976 + $0x160] sm:$0xff] %v2093
                %v2095 = vld [vmem:[%s1975 + $0x178] sm:$0xff]
                %2096 = vst [vmem:[%s1976 + $0x178] sm:$0xff] %v2095
                %v2097 = vld [vmem:[%s1975 + $0x190] sm:$0xff]
                %2098 = vst [vmem:[%s1976 + $0x190] sm:$0xff] %v2097
                %v2099 = vld [vmem:[%s1975 + $0x1a8] sm:$0xff]
                %2100 = vst [vmem:[%s1976 + $0x1a8] sm:$0xff] %v2099
                %v2101 = vld [vmem:[%s1975 + $0x1c0] sm:$0xff]
                %2102 = vst [vmem:[%s1976 + $0x1c0] sm:$0xff] %v2101
                %v2103 = vld [vmem:[%s1975 + $0x1d8] sm:$0xff]
                %2104 = vst [vmem:[%s1976 + $0x1d8] sm:$0xff] %v2103
                %v2105 = vld [vmem:[%s1975 + $0x1f0] sm:$0xff]
                %2106 = vst [vmem:[%s1976 + $0x1f0] sm:$0xff] %v2105
                %v2107 = vld [vmem:[%s1975 + $0x208] sm:$0xff]
                %2108 = vst [vmem:[%s1976 + $0x208] sm:$0xff] %v2107
                %s2109 = sadd.s32 1, %s1974
                %p2110 = scmp.ge.s32.totalorder %s2109, %s1966
                %s2111 = scalar_select %p2110, 0, %s2109
                %s2112 = smul.u32 %s2111, 528
                %s2113 = smul.u32 %s2111, 528
                %s2114 = scalar_lea.vmem %s1947, %s2112 [#allocation4]
                %s2115 = scalar_lea.vmem %s1960, %s2113
              $region45: #{tpu_custom_call.1} parent=39 // loop_footer
                %s1971 = sadd.s32 %s1969, 1
              $region46: #{tpu_custom_call.1} parent=39 // loop_footer_branch
                %1968 = sbr.rel target = $region42
              $region47: #{tpu_custom_call.1} parent=39 // loop_exit
                _
              %s2116 = sdiv.u32.pop %s1954, 22
              %s2117 = srem.u32.pop %s1954, 22
              %s2118 = smul.u32 %s2116, 22
              %s2119 = smul.u32 24, %s2118
              %s2120 = scalar_lea.vmem %s1947, %s2119 [#allocation4]
              %s2121 = smul.u32 24, %s2118
              %s2122 = scalar_lea.vmem %s1960, %s2121
              // While loop
              $region48: #{tpu_custom_call.1} parent=39 // loop_pre_header
                _
              $region49: #{tpu_custom_call.1} parent=39 // loop_header
                %s2124 = sphi 0, %s2126
                %p2125 = scmp.ge.s32.totalorder %s2124, %s2117
                %s2129 = sphi 0, %s2140
                %s2130 = sphi %s2120, %s2143
                %s2131 = sphi %s2122, %s2144
              $region50: #{tpu_custom_call.1} parent=39 // loop_header_branch
                %2128 = sbr.rel (%p2125) target = $region54
              $region51: #{tpu_custom_call.1} parent=39 // loop_body
                %v2132 = vld [vmem:[%s2130] sm:$0xff]
                %2133 = vst [vmem:[%s2131] sm:$0xff] %v2132
                %v2134 = vld [vmem:[%s2130 + $0x8] sm:$0xff]
                %2135 = vst [vmem:[%s2131 + $0x8] sm:$0xff] %v2134
                %v2136 = vld [vmem:[%s2130 + $0x10] sm:$0xff]
                %2137 = vst [vmem:[%s2131 + $0x10] sm:$0xff] %v2136
                %s2138 = sadd.s32 1, %s2129
                %p2139 = scmp.ge.s32.totalorder %s2138, %s2117
                %s2140 = scalar_select %p2139, 0, %s2138
                %s2141 = smul.u32 %s2140, 24
                %s2142 = smul.u32 %s2140, 24
                %s2143 = scalar_lea.vmem %s2120, %s2141 [#allocation4]
                %s2144 = scalar_lea.vmem %s2122, %s2142
              $region52: #{tpu_custom_call.1} parent=39 // loop_footer
                %s2126 = sadd.s32 %s2124, 1
              $region53: #{tpu_custom_call.1} parent=39 // loop_footer_branch
                %2123 = sbr.rel target = $region49
              $region54: #{tpu_custom_call.1} parent=39 // loop_exit
                _
            $region40: #{tpu_custom_call.1} parent=35 // pred_fallthru
              _
            // Predicated region
            $region55: #{tpu_custom_call.1} parent=35 // pred_check
              _
            $region56: #{tpu_custom_call.1} parent=35 // pred_check_branch
              %2146 = sbr.rel target = $region58
            $region57: #{tpu_custom_call.1} parent=35 // pred_region
              _
            $region58: #{tpu_custom_call.1} parent=35 // pred_fallthru
              _
          $region36: #{tpu_custom_call.1} parent=31 // pred_fallthru
            _
          %2147 = vnop
        $region32: #{tpu_custom_call.1} parent=23 // pred_fallthru
          _
      $region24: #{tpu_custom_call.1} parent=5 // pred_fallthru
        _
      %p2148 = scmp.le.s32.totalorder 2, %s10
      // Predicated region
      $region59: #{tpu_custom_call.1} parent=5 // pred_check
        %p2149 = pneg %p2148
      $region60: #{tpu_custom_call.1} parent=5 // pred_check_branch
        %2151 = sbr.rel (%p2149) target = $region62
      $region61: #{tpu_custom_call.1} parent=5 // pred_region
        %s2152 = ssub.s32 %s10, 2
        // Predicated region
        $region63: #{tpu_custom_call.1} parent=61 // pred_check
          %p2153 = pneg %p65
        $region64: #{tpu_custom_call.1} parent=61 // pred_check_branch
          %2155 = sbr.rel (%p2153) target = $region66
        $region65: #{tpu_custom_call.1} parent=61 // pred_region
          %s2156 = sand.u32 %s50, 1
          %s2157 = sand.u32 %s50, 1
          %s2158 = smul.addr %s2157, 6144
          %s2159 = scalar_lea.vmem [#allocation4], %s2158
        $region66: #{tpu_custom_call.1} parent=61 // pred_fallthru
          _
      $region62: #{tpu_custom_call.1} parent=5 // pred_fallthru
        _
    $region6: #{tpu_custom_call.1} parent=1 // loop_footer
      %s14 = sadd.s32 1, %s10
    $region7: #{tpu_custom_call.1} parent=1 // loop_footer_branch
      %9 = sbr.rel target = $region3
    $region8: #{tpu_custom_call.1} parent=1 // loop_exit
      _
    %2160 = vsyncpa [#allocation3], 1
    %s2161 = scalar_lea.sflag [#allocation3], 1
    %2162 = vsyncpa %s2161, 1

</llo_original>
